<compile_context>
chip_gen: v7x
topology: tpu7x:2x2x1
jax: 0.10.0
libtpu: 0.0.40
codegen_flags: <defaults>
</compile_context>

<pallas_src>
import functools

import jax
import jax.numpy as jnp
from jax import lax
from jax.experimental import pallas as pl
from jax.experimental.pallas import tpu as pltpu

DATAINPUT = 31
HIDDEN = 22
ROUTPUT = 3

LANE = 128
TB_MAX_T = 16384            # lane-dense path: max batch columns per grid step
TB_MAX_N = 4096             # natural-layout path: max batch rows per grid step
VMEM_LIMIT_BYTES = 32 * 1024 * 1024


def _round_up(n, m):
    return ((n + m - 1) // m) * m


def _choose_tiles(batch, tb_max, unit=LANE):
    """Balanced batch tiling.

    Returns (tile, num_tiles, padded_batch): tile is a multiple of `unit`,
    num_tiles is even (>= 2) whenever batch allows so the "parallel" grid axis
    feeds both v7x TensorCores and double-buffering has >1 step, and padding is
    limited to O(num_tiles * unit) columns (not a full max-size tile).
    """
    bu = _round_up(batch, unit)
    nt = max(1, pl.cdiv(bu, tb_max))
    if bu >= 2 * unit:
        nt = max(nt, 2)
        if nt % 2:
            nt += 1
    tile = _round_up(pl.cdiv(bu, nt), unit)
    return tile, nt, nt * tile


def _tiled_spec(block_shape, index_map, buffers):
    """Streamed-input BlockSpec with optional deeper pipelining (safe fallback)."""
    if buffers > 2 and hasattr(pl, "Buffered"):
        try:
            return pl.BlockSpec(block_shape, index_map,
                                pipeline_mode=pl.Buffered(buffers))
        except TypeError:   # jax version without pipeline_mode
            pass
    return pl.BlockSpec(block_shape, index_map)


def _resident_spec(arr):
    nd = arr.ndim
    return pl.BlockSpec(arr.shape, lambda i: (0,) * nd)   # DMA once, stay in VMEM


def _precision_for(dtype):
    # Pin MXU precision so numerics/perf are deterministic across environments.
    return lax.Precision.HIGHEST if dtype == jnp.float32 else lax.Precision.DEFAULT


def _cost_estimate(batch, itemsize):
    flops = 2 * batch * (DATAINPUT * HIDDEN + HIDDEN * HIDDEN + HIDDEN * ROUTPUT)
    weight_bytes = 4 * (DATAINPUT * HIDDEN + HIDDEN * HIDDEN + HIDDEN * ROUTPUT
                        + 2 * HIDDEN + ROUTPUT)
    bytes_accessed = itemsize * batch * (DATAINPUT + ROUTPUT) + weight_bytes
    return pl.CostEstimate(flops=int(flops), transcendentals=0,
                           bytes_accessed=int(bytes_accessed))


# --------------------------------------------------------------------------- #
# Kernels
# --------------------------------------------------------------------------- #
def _mlp_kernel_t(xT_ref, w1_ref, b1_ref, w2_ref, b2_ref, w3_ref, b3_ref, o_ref,
                  *, precision):
    """Lane-dense tile: x^T (DATAINPUT, TB) -> out^T (ROUTPUT, TB)."""
    cdt = w1_ref.dtype
    # fc1 + LeakyReLU(0.01): (22, 31) @ (31, TB) -> f32 (22, TB)
    h1 = jnp.dot(w1_ref[...], xT_ref[...], preferred_element_type=jnp.float32,
                 precision=precision) + b1_ref[...]
    h1 = jnp.where(h1 > 0, h1, 0.01 * h1)
    # fc2 + ReLU: (22, 22) @ (22, TB)
    h2 = jnp.dot(w2_ref[...], h1.astype(cdt), preferred_element_type=jnp.float32,
                 precision=precision) + b2_ref[...]
    h2 = jnp.maximum(h2, 0.0)
    # fcoutput: (3, 22) @ (22, TB); full-lane, unmasked store.
    out = jnp.dot(w3_ref[...], h2.astype(cdt), preferred_element_type=jnp.float32,
                  precision=precision) + b3_ref[...]
    o_ref[...] = out.astype(o_ref.dtype)


def _mlp_kernel_n(x_ref, w1t_ref, b1_ref, w2t_ref, b2_ref, w3t_ref, b3_ref, o_ref,
                  *, precision):
    """Natural-layout tile: x (TB, DATAINPUT) -> out (TB, ROUTPUT)."""
    cdt = w1t_ref.dtype
    h1 = jnp.dot(x_ref[...], w1t_ref[...], preferred_element_type=jnp.float32,
                 precision=precision) + b1_ref[...]
    h1 = jnp.where(h1 > 0, h1, 0.01 * h1)
    h2 = jnp.dot(h1.astype(cdt), w2t_ref[...], preferred_element_type=jnp.float32,
                 precision=precision) + b2_ref[...]
    h2 = jnp.maximum(h2, 0.0)
    out = jnp.dot(h2.astype(cdt), w3t_ref[...], preferred_element_type=jnp.float32,
                  precision=precision) + b3_ref[...]
    o_ref[...] = out.astype(o_ref.dtype)


# --------------------------------------------------------------------------- #
# Wrappers
# --------------------------------------------------------------------------- #
@functools.partial(jax.jit, static_argnames=("tb_max", "input_buffers"))
def swpm_forward_t(xT, params, *, tb_max=TB_MAX_T, input_buffers=2):
    """Lane-dense fast path. xT: (DATAINPUT, B) f32/bf16 -> (ROUTPUT, B) same dtype.

    Pass xT as bfloat16 to halve HBM traffic (f32 accumulation inside).
    On v7x with many grid steps, input_buffers=3 deepens the input pipeline.
    """
    d, batch = xT.shape
    assert d == DATAINPUT
    cdt = xT.dtype
    precision = _precision_for(cdt)

    w1 = params["w1"].astype(cdt)
    w2 = params["w2"].astype(cdt)
    w3 = params["w3"].astype(cdt)
    b1 = params["b1"].astype(jnp.float32).reshape(HIDDEN, 1)
    b2 = params["b2"].astype(jnp.float32).reshape(HIDDEN, 1)
    b3 = params["b3"].astype(jnp.float32).reshape(ROUTPUT, 1)

    tile, nt, b_pad = _choose_tiles(batch, tb_max)
    if b_pad != batch:
        xT = jnp.pad(xT, ((0, 0), (0, b_pad - batch)))

    outT = pl.pallas_call(
        functools.partial(_mlp_kernel_t, precision=precision),
        out_shape=jax.ShapeDtypeStruct((ROUTPUT, b_pad), cdt),
        grid=(nt,),
        in_specs=[
            _tiled_spec((DATAINPUT, tile), lambda i: (0, i), input_buffers),
            _resident_spec(w1), _resident_spec(b1),
            _resident_spec(w2), _resident_spec(b2),
            _resident_spec(w3), _resident_spec(b3),
        ],
        out_specs=pl.BlockSpec((ROUTPUT, tile), lambda i: (0, i)),
        compiler_params=pltpu.CompilerParams(
            dimension_semantics=("parallel",),          # batch axis -> v7x megacore
            vmem_limit_bytes=VMEM_LIMIT_BYTES),
        cost_estimate=_cost_estimate(b_pad, jnp.dtype(cdt).itemsize),
    )(xT, w1, b1, w2, b2, w3, b3)

    return outT[:, :batch]


@functools.partial(jax.jit, static_argnames=("tb_max", "input_buffers"))
def swpm_forward(x, params, *, tb_max=TB_MAX_N, input_buffers=2):
    """Natural-layout path. x: (B, DATAINPUT) f32/bf16 -> (B, ROUTPUT) same dtype.

    Computes directly in (rows, features) layout inside the kernel -- no
    standalone XLA transposes of x or the output, so HBM traffic is identical
    to the lane-dense path.
    """
    batch, d = x.shape
    assert d == DATAINPUT
    cdt = x.dtype
    precision = _precision_for(cdt)

    w1t = params["w1"].T.astype(cdt)     # (31, 22)
    w2t = params["w2"].T.astype(cdt)     # (22, 22)
    w3t = params["w3"].T.astype(cdt)     # (22, 3)
    b1 = params["b1"].astype(jnp.float32).reshape(1, HIDDEN)
    b2 = params["b2"].astype(jnp.float32).reshape(1, HIDDEN)
    b3 = params["b3"].astype(jnp.float32).reshape(1, ROUTPUT)

    tile, nt, b_pad = _choose_tiles(batch, tb_max)
    if b_pad != batch:
        x = jnp.pad(x, ((0, b_pad - batch), (0, 0)))

    out = pl.pallas_call(
        functools.partial(_mlp_kernel_n, precision=precision),
        out_shape=jax.ShapeDtypeStruct((b_pad, ROUTPUT), cdt),
        grid=(nt,),
        in_specs=[
            _tiled_spec((tile, DATAINPUT), lambda i: (i, 0), input_buffers),
            _resident_spec(w1t), _resident_spec(b1),
            _resident_spec(w2t), _resident_spec(b2),
            _resident_spec(w3t), _resident_spec(b3),
        ],
        out_specs=pl.BlockSpec((tile, ROUTPUT), lambda i: (i, 0)),
        compiler_params=pltpu.CompilerParams(
            dimension_semantics=("parallel",),
            vmem_limit_bytes=VMEM_LIMIT_BYTES),
        cost_estimate=_cost_estimate(b_pad, jnp.dtype(cdt).itemsize),
    )(x, w1t, b1, w2t, b2, w3t, b3)

    return out[:batch, :]


# --------------------------------------------------------------------------- #
# Params / reference / self-test
# --------------------------------------------------------------------------- #
def init_params(key):
    """nn.Linear-style init: weight (out, in), bias (out,)."""
    def linear(k, fan_in, fan_out):
        kw, kb = jax.random.split(k)
        bound = 1.0 / jnp.sqrt(jnp.float32(fan_in))
        w = jax.random.uniform(kw, (fan_out, fan_in), jnp.float32, -bound, bound)
        b = jax.random.uniform(kb, (fan_out,), jnp.float32, -bound, bound)
        return w, b

    k1, k2, k3 = jax.random.split(key, 3)
    w1, b1 = linear(k1, DATAINPUT, HIDDEN)
    w2, b2 = linear(k2, HIDDEN, HIDDEN)
    w3, b3 = linear(k3, HIDDEN, ROUTPUT)
    return {"w1": w1, "b1": b1, "w2": w2, "b2": b2, "w3": w3, "b3": b3}


def _reference(x, params):
    """Pure-JAX reference in PyTorch convention (y = x @ W.T + b), precision pinned."""
    p = lax.Precision.HIGHEST
    h1 = jnp.dot(x, params["w1"].T, precision=p) + params["b1"]
    h1 = jnp.where(h1 > 0, h1, 0.01 * h1)
    h2 = jnp.maximum(jnp.dot(h1, params["w2"].T, precision=p) + params["b2"], 0.0)
    return jnp.dot(h2, params["w3"].T, precision=p) + params["b3"]


if __name__ == "__main__":
    key = jax.random.PRNGKey(0)
    k_param, k_x1, k_x2 = jax.random.split(key, 3)
    params = init_params(k_param)

    # 1) Lane-dense fast path, small batch, f32 (precision HIGHEST inside).
    b_small = 8
    x_small = jax.random.normal(k_x1, (b_small, DATAINPUT), jnp.float32)
    out_t = jax.block_until_ready(swpm_forward_t(x_small.T, params))
    ref_small = _reference(x_small, params)
    assert out_t.shape == (ROUTPUT, b_small)
    assert jnp.allclose(out_t.T, ref_small, atol=1e-5, rtol=1e-5)

    # 2) Natural (B, 31) layout; multi-tile + padded-batch path (B not /128).
    b_odd = 300
    x_odd = jax.random.normal(k_x2, (b_odd, DATAINPUT), jnp.float32)
    out_n = jax.block_until_ready(swpm_forward(x_odd, params, tb_max=128))
    ref_odd = _reference(x_odd, params)
    assert out_n.shape == (b_odd, ROUTPUT)
    assert jnp.allclose(out_n, ref_odd, atol=1e-5, rtol=1e-5)

    # 3) bf16 ingestion path (half the streamed HBM bytes), loose tolerance.
    out_bf16 = jax.block_until_ready(
        swpm_forward_t(x_small.T.astype(jnp.bfloat16), params))
    assert out_bf16.dtype == jnp.bfloat16
    assert jnp.allclose(out_bf16.astype(jnp.float32).T, ref_small,
                        atol=1e-1, rtol=1e-1)

    print("KERNEL_OK")
</pallas_src>

<mosaic_0001>
module attributes {stable_mosaic.version = 11 : i64} {
  func.func @_mlp_kernel_t(%arg0: i32, %arg1: memref<31x128xf32, #tpu.memory_space<vmem>>, %arg2: memref<22x31xf32, #tpu.memory_space<vmem>>, %arg3: memref<22x1xf32, #tpu.memory_space<vmem>>, %arg4: memref<22x22xf32, #tpu.memory_space<vmem>>, %arg5: memref<22x1xf32, #tpu.memory_space<vmem>>, %arg6: memref<3x22xf32, #tpu.memory_space<vmem>>, %arg7: memref<3x1xf32, #tpu.memory_space<vmem>>, %arg8: memref<3x128xf32, #tpu.memory_space<vmem>>) attributes {dimension_semantics = [#tpu.dimension_semantics<parallel>], iteration_bounds = array<i64: 1>, scalar_prefetch = 0 : i64, scratch_operands = 0 : i64, tpu.core_type = #tpu.core_type<tc>, window_params = [{transform_indices = @transform_0, window_bounds = array<i64: 31, 128>}, {pipeline_mode = #tpu.pipeline_mode<synchronous>, transform_indices = @transform_1, window_bounds = array<i64: 22, 31>}, {pipeline_mode = #tpu.pipeline_mode<synchronous>, transform_indices = @transform_2, window_bounds = array<i64: 22, 1>}, {pipeline_mode = #tpu.pipeline_mode<synchronous>, transform_indices = @transform_3, window_bounds = array<i64: 22, 22>}, {pipeline_mode = #tpu.pipeline_mode<synchronous>, transform_indices = @transform_4, window_bounds = array<i64: 22, 1>}, {pipeline_mode = #tpu.pipeline_mode<synchronous>, transform_indices = @transform_5, window_bounds = array<i64: 3, 22>}, {pipeline_mode = #tpu.pipeline_mode<synchronous>, transform_indices = @transform_6, window_bounds = array<i64: 3, 1>}, {transform_indices = @transform_7, window_bounds = array<i64: 3, 128>}]} {
    %c0 = arith.constant 0 : index
    %c0_0 = arith.constant 0 : index
    %0 = vector.load %arg2[%c0, %c0_0] : memref<22x31xf32, #tpu.memory_space<vmem>>, vector<22x31xf32>
    %c0_1 = arith.constant 0 : index
    %c0_2 = arith.constant 0 : index
    %1 = vector.load %arg1[%c0_1, %c0_2] : memref<31x128xf32, #tpu.memory_space<vmem>>, vector<31x128xf32>
    %cst = arith.constant dense<0.000000e+00> : vector<22x128xf32>
    %2 = tpu.matmul %0, %1, %cst {dimension_numbers = #tpu.dot_dimension_numbers<[1], [0], [0], [1], [0, 0, 1, 1], [], []>, precision = #tpu.contract_precision<fp32>} : vector<22x31xf32>, vector<31x128xf32>, vector<22x128xf32> -> vector<22x128xf32>
    %c0_3 = arith.constant 0 : index
    %c0_4 = arith.constant 0 : index
    %3 = vector.load %arg3[%c0_3, %c0_4] : memref<22x1xf32, #tpu.memory_space<vmem>>, vector<22x1xf32>
    %4 = vector.broadcast %3 : vector<22x1xf32> to vector<22x128xf32>
    %5 = arith.addf %2, %4 : vector<22x128xf32>
    %cst_5 = arith.constant 0.000000e+00 : f32
    %6 = vector.broadcast %cst_5 : f32 to vector<22x128xf32>
    %7 = arith.cmpf ogt, %5, %6 : vector<22x128xf32>
    %cst_6 = arith.constant 0.00999999977 : f32
    %8 = vector.broadcast %cst_6 : f32 to vector<22x128xf32>
    %9 = arith.mulf %8, %5 : vector<22x128xf32>
    %10 = arith.select %7, %5, %9 : vector<22x128xi1>, vector<22x128xf32>
    %c0_7 = arith.constant 0 : index
    %c0_8 = arith.constant 0 : index
    %11 = vector.load %arg4[%c0_7, %c0_8] : memref<22x22xf32, #tpu.memory_space<vmem>>, vector<22x22xf32>
    %cst_9 = arith.constant dense<0.000000e+00> : vector<22x128xf32>
    %12 = tpu.matmul %11, %10, %cst_9 {dimension_numbers = #tpu.dot_dimension_numbers<[1], [0], [0], [1], [0, 0, 1, 1], [], []>, precision = #tpu.contract_precision<fp32>} : vector<22x22xf32>, vector<22x128xf32>, vector<22x128xf32> -> vector<22x128xf32>
    %c0_10 = arith.constant 0 : index
    %c0_11 = arith.constant 0 : index
    %13 = vector.load %arg5[%c0_10, %c0_11] : memref<22x1xf32, #tpu.memory_space<vmem>>, vector<22x1xf32>
    %14 = vector.broadcast %13 : vector<22x1xf32> to vector<22x128xf32>
    %15 = arith.addf %12, %14 : vector<22x128xf32>
    %cst_12 = arith.constant 0.000000e+00 : f32
    %16 = vector.broadcast %cst_12 : f32 to vector<22x128xf32>
    %17 = arith.maximumf %15, %16 : vector<22x128xf32>
    %c0_13 = arith.constant 0 : index
    %c0_14 = arith.constant 0 : index
    %18 = vector.load %arg6[%c0_13, %c0_14] : memref<3x22xf32, #tpu.memory_space<vmem>>, vector<3x22xf32>
    %cst_15 = arith.constant dense<0.000000e+00> : vector<3x128xf32>
    %19 = tpu.matmul %18, %17, %cst_15 {dimension_numbers = #tpu.dot_dimension_numbers<[1], [0], [0], [1], [0, 0, 1, 1], [], []>, precision = #tpu.contract_precision<fp32>} : vector<3x22xf32>, vector<22x128xf32>, vector<3x128xf32> -> vector<3x128xf32>
    %c0_16 = arith.constant 0 : index
    %c0_17 = arith.constant 0 : index
    %20 = vector.load %arg7[%c0_16, %c0_17] : memref<3x1xf32, #tpu.memory_space<vmem>>, vector<3x1xf32>
    %21 = vector.broadcast %20 : vector<3x1xf32> to vector<3x128xf32>
    %22 = arith.addf %19, %21 : vector<3x128xf32>
    %c0_18 = arith.constant 0 : index
    %c0_19 = arith.constant 0 : index
    %23 = vector.load %arg8[%c0_18, %c0_19] : memref<3x128xf32, #tpu.memory_space<vmem>>, vector<3x128xf32>
    tpu.vector_store %arg8[%c0_18, %c0_19], %22 {strides = array<i32>} : memref<3x128xf32, #tpu.memory_space<vmem>>, vector<3x128xf32>,
    return
  }
  func.func @transform_0(%arg0: i32) -> (i32, i32) {
    %c0_i32 = arith.constant 0 : i32
    %c0_i32_0 = arith.constant 0 : i32
    return %c0_i32, %arg0 : i32, i32
  }
  func.func @transform_1(%arg0: i32) -> (i32, i32) {
    %c0_i32 = arith.constant 0 : i32
    %c0_i32_0 = arith.constant 0 : i32
    %c0_i32_1 = arith.constant 0 : i32
    return %c0_i32, %c0_i32_0 : i32, i32
  }
  func.func @transform_2(%arg0: i32) -> (i32, i32) {
    %c0_i32 = arith.constant 0 : i32
    %c0_i32_0 = arith.constant 0 : i32
    %c0_i32_1 = arith.constant 0 : i32
    return %c0_i32, %c0_i32_0 : i32, i32
  }
  func.func @transform_3(%arg0: i32) -> (i32, i32) {
    %c0_i32 = arith.constant 0 : i32
    %c0_i32_0 = arith.constant 0 : i32
    %c0_i32_1 = arith.constant 0 : i32
    return %c0_i32, %c0_i32_0 : i32, i32
  }
  func.func @transform_4(%arg0: i32) -> (i32, i32) {
    %c0_i32 = arith.constant 0 : i32
    %c0_i32_0 = arith.constant 0 : i32
    %c0_i32_1 = arith.constant 0 : i32
    return %c0_i32, %c0_i32_0 : i32, i32
  }
  func.func @transform_5(%arg0: i32) -> (i32, i32) {
    %c0_i32 = arith.constant 0 : i32
    %c0_i32_0 = arith.constant 0 : i32
    %c0_i32_1 = arith.constant 0 : i32
    return %c0_i32, %c0_i32_0 : i32, i32
  }
  func.func @transform_6(%arg0: i32) -> (i32, i32) {
    %c0_i32 = arith.constant 0 : i32
    %c0_i32_0 = arith.constant 0 : i32
    %c0_i32_1 = arith.constant 0 : i32
    return %c0_i32, %c0_i32_0 : i32, i32
  }
  func.func @transform_7(%arg0: i32) -> (i32, i32) {
    %c0_i32 = arith.constant 0 : i32
    %c0_i32_0 = arith.constant 0 : i32
    return %c0_i32, %arg0 : i32, i32
  }
}

</mosaic_0001>

<llo_original>
// kernel: swpm_forward_t.1
$region0: #{swpm_forward_t.1}
  #allocation0 [shape = 'u32[]', space=smem, size = 0x4, offset = 0x4, fixed_abs, tag = 'smem constant byte address 0x4 - core index']
  #allocation1 [shape = 'u32[144,128]{1,0:T(1,128)}', space=vmem, size = 0x12000, scoped, tag = 'internal scratch']
  %s0 = inlined_call_operand.vmem [shape: f32[31,128], index: 0, kind: input, shape index: {}]
  %s1 = inlined_call_operand.vmem [shape: f32[22,31], index: 1, kind: input, shape index: {}]
  %s2 = inlined_call_operand.vmem [shape: f32[22,1], index: 2, kind: input, shape index: {}]
  %s3 = inlined_call_operand.vmem [shape: f32[22,22], index: 3, kind: input, shape index: {}]
  %s4 = inlined_call_operand.vmem [shape: f32[22,1], index: 4, kind: input, shape index: {}]
  %s5 = inlined_call_operand.vmem [shape: f32[3,22], index: 5, kind: input, shape index: {}]
  %s6 = inlined_call_operand.vmem [shape: f32[3,1], index: 6, kind: input, shape index: {}]
  %s7 = inlined_call_operand.hbm [shape: f32[3,128], index: 7, kind: output, shape index: {}]
  %s8 = sld [smem:[#allocation0]]
  $region38: #{swpm_forward_t.1} parent=0
    _
  %s10 = ssub.s32 1, %s8
  %s11 = scalar_select 0, %s10, %s8
  $region1: #{swpm_forward_t.1} parent=0
    #allocation2 [shape = 'u8[2048]{0}', space=vmem, size = 0x800, scoped, tag = 'output window, operand 0, single buffered']
    #allocation3 [shape = 's32[1]{0}', space=sflag, size = 0x4, scoped, tag = 'scoped memory for swpm_forward_t.1']
    %12 = vsyncpa [#allocation3], 0
    // Predicated region
    $region2: #{swpm_forward_t.1} parent=1 // pred_check
      _
    $region3: #{swpm_forward_t.1} parent=1 // pred_check_branch
      %14 = sbr.rel (0) target = $region5
    $region4: #{swpm_forward_t.1} parent=1 // pred_region
      _
    $region5: #{swpm_forward_t.1} parent=1 // pred_fallthru
      _
    // Predicated region
    $region6: #{swpm_forward_t.1} parent=1 // pred_check
      _
    $region7: #{swpm_forward_t.1} parent=1 // pred_check_branch
      %16 = sbr.rel (0) target = $region9
    $region8: #{swpm_forward_t.1} parent=1 // pred_region
      _
    $region9: #{swpm_forward_t.1} parent=1 // pred_fallthru
      _
    // Predicated region
    $region10: #{swpm_forward_t.1} parent=1 // pred_check
      _
    $region11: #{swpm_forward_t.1} parent=1 // pred_check_branch
      %18 = sbr.rel (0) target = $region13
    $region12: #{swpm_forward_t.1} parent=1 // pred_region
      _
    $region13: #{swpm_forward_t.1} parent=1 // pred_fallthru
      _
    // Predicated region
    $region14: #{swpm_forward_t.1} parent=1 // pred_check
      _
    $region15: #{swpm_forward_t.1} parent=1 // pred_check_branch
      %20 = sbr.rel (0) target = $region17
    $region16: #{swpm_forward_t.1} parent=1 // pred_region
      _
    $region17: #{swpm_forward_t.1} parent=1 // pred_fallthru
      _
    // Predicated region
    $region18: #{swpm_forward_t.1} parent=1 // pred_check
      _
    $region19: #{swpm_forward_t.1} parent=1 // pred_check_branch
      %22 = sbr.rel (0) target = $region21
    $region20: #{swpm_forward_t.1} parent=1 // pred_region
      _
    $region21: #{swpm_forward_t.1} parent=1 // pred_fallthru
      _
    // Predicated region
    $region22: #{swpm_forward_t.1} parent=1 // pred_check
      _
    $region23: #{swpm_forward_t.1} parent=1 // pred_check_branch
      %24 = sbr.rel (0) target = $region25
    $region24: #{swpm_forward_t.1} parent=1 // pred_region
      _
    $region25: #{swpm_forward_t.1} parent=1 // pred_fallthru
      _
    // Predicated region
    $region26: #{swpm_forward_t.1} parent=1 // pred_check
      _
    $region27: #{swpm_forward_t.1} parent=1 // pred_check_branch
      %26 = sbr.rel (0) target = $region29
    $region28: #{swpm_forward_t.1} parent=1 // pred_region
      _
    $region29: #{swpm_forward_t.1} parent=1 // pred_fallthru
      _
    %v27 = vld [vmem:[%s1] sm:$0xff]
    %v28 = vld [vmem:[%s1 + $0x8] sm:$0xff]
    %v29 = vld [vmem:[%s1 + $0x10] sm:$0x3f]
    %v30 = vld [vmem:[%s0] sm:$0xff]
    %v31 = vld [vmem:[%s0 + $0x8] sm:$0xff]
    %v32 = vld [vmem:[%s0 + $0x10] sm:$0xff]
    %v33 = vld [vmem:[%s0 + $0x18] sm:$0x7f]
    %v34 = vld [vmem:[%s2] sm:$0xff]
    %v35 = vld [vmem:[%s2 + $0x8] sm:$0xff]
    %v36 = vld [vmem:[%s2 + $0x10] sm:$0x3f]
    %38 = vset.pattern.permute.xlu0 0
    %39 = vperm.xlu0 %38, %v34
    %v40 = vpop.permute.xlu0 %39
    %43 = vset.pattern.permute.xlu0 0
    %44 = vperm.xlu0 %43, %v35
    %v45 = vpop.permute.xlu0 %44
    %48 = vset.pattern.permute.xlu0 0
    %49 = vperm.xlu0 %48, %v36
    %v50 = vpop.permute.xlu0 %49
    %vm52 = vcmask 252928
    %v54 = vsel %vm52, %v27, 0
    %v57 = vsel %vm52, %v28, 0
    %v60 = vsel %vm52, %v29, 0
    %vm62 = vcmask 1046528
    %v64 = vsel %vm62, %v33, 0
    %66 = vmatprep.subr.mxu0 0.0
    %v67 = vand.u32 %v30, 4294901760
    %68 = vmatpush1.msra.mxu0 %v67
    %69 = vmatprep.subr.mxu0 0.0
    %v70 = vand.u32 %v31, 4294901760
    %71 = vmatpush1.msra.mxu0 %v70
    %72 = vmatprep.subr.mxu0 0.0
    %v73 = vand.u32 %v32, 4294901760
    %74 = vmatpush1.msra.mxu0 %v73
    %75 = vmatprep.subr.mxu0 0.0
    %v76 = vand.u32 %v64, 4294901760
    %77 = vmatpush1.msra.mxu0 %v76
    %78 = vmatprep.subr.mxu0 0.0
    %79 = vmatpush1.msra.mxu0 0.0
    %80 = vmatprep.subr.mxu0 0.0
    %81 = vmatpush1.msra.mxu0 0.0
    %82 = vmatprep.subr.mxu0 0.0
    %83 = vmatpush1.msra.mxu0 0.0
    %84 = vmatprep.subr.mxu0 0.0
    %85 = vmatpush1.msra.mxu0 0.0
    %86 = vmatprep.subr.mxu0 0.0
    %87 = vmatpush1.msra.mxu0 0.0
    %88 = vmatprep.subr.mxu0 0.0
    %89 = vmatpush1.msra.mxu0 0.0
    %90 = vmatprep.subr.mxu0 0.0
    %91 = vmatpush1.msra.mxu0 0.0
    %92 = vmatprep.subr.mxu0 0.0
    %93 = vmatpush1.msra.mxu0 0.0
    %94 = vmatprep.subr.mxu0 0.0
    %95 = vmatpush1.msra.mxu0 0.0
    %96 = vmatprep.subr.mxu0 0.0
    %97 = vmatpush1.msra.mxu0 0.0
    %98 = vmatprep.subr.mxu0 0.0
    %99 = vmatpush1.msra.mxu0 0.0
    %100 = vmatprep.subr.mxu0 0.0
    %101 = vmatpush1.msra.mxu0 0.0
    %102 = vmatprep.subr.mxu0 0.0
    %103 = vmatpush1.msra.mxu0 0.0
    %104 = vmatprep.subr.mxu0 0.0
    %105 = vmatpush1.msra.mxu0 0.0
    %106 = vmatprep.subr.mxu0 0.0
    %107 = vmatpush1.msra.mxu0 0.0
    %108 = vmatprep.subr.mxu0 0.0
    %109 = vmatpush1.msra.mxu0 0.0
    %110 = vmatprep.subr.mxu0 0.0
    %111 = vmatpush1.msra.mxu0 0.0
    %112 = vmatprep.subr.mxu0 0.0
    %113 = vmatpush1.msra.mxu0 0.0
    %114 = vmatprep.subr.mxu0 0.0
    %115 = vmatpush1.msra.mxu0 0.0
    %116 = vmatprep.subr.mxu0 0.0
    %117 = vmatpush1.msra.mxu0 0.0
    %118 = vmatprep.subr.mxu0 0.0
    %119 = vmatpush1.msra.mxu0 0.0
    %120 = vmatprep.subr.mxu0 0.0
    %121 = vmatpush1.msra.mxu0 0.0
    %122 = vmatprep.subr.mxu0 0.0
    %123 = vmatpush1.msra.mxu0 0.0
    %124 = vmatprep.subr.mxu0 0.0
    %125 = vmatpush1.msra.mxu0 0.0
    %126 = vmatprep.subr.mxu0 0.0
    %127 = vmatpush1.msra.mxu0 0.0
    %128 = vmatprep.subr.mxu0 0.0
    %129 = vmatpush1.msra.mxu0 0.0
    %130 = vmatprep.subr.mxu0 0.0
    %131 = vmatpush1.msra.mxu0 0.0
    %132 = vmatprep.subr.mxu0 0.0
    %133 = vmatpush1.msra.mxu0 0.0
    %134 = vmatprep.mubr.f32.mxu0 0.0
    %v135 = vand.u32 %v54, 4294901760
    %v136 = vsub.f32 %v54, %v135
    %v137 = vand.u32 %v136, 4294901760
    %v138 = vsub.f32 %v136, %v137
    %v139 = vand.u32 %v138, 4294901760
    %140 = vmatmul.mubr.f32.gmra.mrb[0].mxu0 %v139
    %v141 = vpop.f32.mrb[0].mxu0
    %v142 = vadd.f32 %v40, %v141
    %v143 = vpop.f32.mrb[0].mxu0
    %144 = vmatprep.mubr.f32.mxu0 0.0
    %v145 = vand.u32 %v57, 4294901760
    %v146 = vsub.f32 %v57, %v145
    %v147 = vand.u32 %v146, 4294901760
    %v148 = vsub.f32 %v146, %v147
    %v149 = vand.u32 %v148, 4294901760
    %150 = vmatmul.mubr.f32.gmra.mrb[0].mxu0 %v149
    %v151 = vpop.f32.mrb[0].mxu0
    %v152 = vadd.f32 %v45, %v151
    %v153 = vpop.f32.mrb[0].mxu0
    %154 = vmatprep.mubr.f32.mxu0 0.0
    %v155 = vand.u32 %v60, 4294901760
    %v156 = vsub.f32 %v60, %v155
    %v157 = vand.u32 %v156, 4294901760
    %v158 = vsub.f32 %v156, %v157
    %v159 = vand.u32 %v158, 4294901760
    %160 = vmatmul.mubr.f32.gmra.mrb[0].mxu0 %v159
    %v161 = vpop.f32.mrb[0].mxu0
    %v162 = vadd.f32 %v50, %v161
    %v163 = vpop.f32.mrb[0].mxu0
    %164 = vdwg.mxu0
    %165 = vmatprep.subr.mxu0 0.0
    %v166 = vand.u32 %v30, 4294901760
    %v167 = vsub.f32 %v30, %v166
    %v168 = vand.u32 %v167, 4294901760
    %v169 = vsub.f32 %v167, %v168
    %v170 = vand.u32 %v169, 4294901760
    %171 = vmatpush1.msra.mxu0 %v170
    %172 = vmatprep.subr.mxu0 0.0
    %v173 = vand.u32 %v31, 4294901760
    %v174 = vsub.f32 %v31, %v173
    %v175 = vand.u32 %v174, 4294901760
    %v176 = vsub.f32 %v174, %v175
    %v177 = vand.u32 %v176, 4294901760
    %178 = vmatpush1.msra.mxu0 %v177
    %179 = vmatprep.subr.mxu0 0.0
    %v180 = vand.u32 %v32, 4294901760
    %v181 = vsub.f32 %v32, %v180
    %v182 = vand.u32 %v181, 4294901760
    %v183 = vsub.f32 %v181, %v182
    %v184 = vand.u32 %v183, 4294901760
    %185 = vmatpush1.msra.mxu0 %v184
    %186 = vmatprep.subr.mxu0 0.0
    %v187 = vand.u32 %v64, 4294901760
    %v188 = vsub.f32 %v64, %v187
    %v189 = vand.u32 %v188, 4294901760
    %v190 = vsub.f32 %v188, %v189
    %v191 = vand.u32 %v190, 4294901760
    %192 = vmatpush1.msra.mxu0 %v191
    %193 = vmatprep.subr.mxu0 0.0
    %194 = vmatpush1.msra.mxu0 0.0
    %195 = vmatprep.subr.mxu0 0.0
    %196 = vmatpush1.msra.mxu0 0.0
    %197 = vmatprep.subr.mxu0 0.0
    %198 = vmatpush1.msra.mxu0 0.0
    %199 = vmatprep.subr.mxu0 0.0
    %200 = vmatpush1.msra.mxu0 0.0
    %201 = vmatprep.subr.mxu0 0.0
    %202 = vmatpush1.msra.mxu0 0.0
    %203 = vmatprep.subr.mxu0 0.0
    %204 = vmatpush1.msra.mxu0 0.0
    %205 = vmatprep.subr.mxu0 0.0
    %206 = vmatpush1.msra.mxu0 0.0
    %207 = vmatprep.subr.mxu0 0.0
    %208 = vmatpush1.msra.mxu0 0.0
    %209 = vmatprep.subr.mxu0 0.0
    %210 = vmatpush1.msra.mxu0 0.0
    %211 = vmatprep.subr.mxu0 0.0
    %212 = vmatpush1.msra.mxu0 0.0
    %213 = vmatprep.subr.mxu0 0.0
    %214 = vmatpush1.msra.mxu0 0.0
    %215 = vmatprep.subr.mxu0 0.0
    %216 = vmatpush1.msra.mxu0 0.0
    %217 = vmatprep.subr.mxu0 0.0
    %218 = vmatpush1.msra.mxu0 0.0
    %219 = vmatprep.subr.mxu0 0.0
    %220 = vmatpush1.msra.mxu0 0.0
    %221 = vmatprep.subr.mxu0 0.0
    %222 = vmatpush1.msra.mxu0 0.0
    %223 = vmatprep.subr.mxu0 0.0
    %224 = vmatpush1.msra.mxu0 0.0
    %225 = vmatprep.subr.mxu0 0.0
    %226 = vmatpush1.msra.mxu0 0.0
    %227 = vmatprep.subr.mxu0 0.0
    %228 = vmatpush1.msra.mxu0 0.0
    %229 = vmatprep.subr.mxu0 0.0
    %230 = vmatpush1.msra.mxu0 0.0
    %231 = vmatprep.subr.mxu0 0.0
    %232 = vmatpush1.msra.mxu0 0.0
    %233 = vmatprep.subr.mxu0 0.0
    %234 = vmatpush1.msra.mxu0 0.0
    %235 = vmatprep.subr.mxu0 0.0
    %236 = vmatpush1.msra.mxu0 0.0
    %237 = vmatprep.subr.mxu0 0.0
    %238 = vmatpush1.msra.mxu0 0.0
    %239 = vmatprep.subr.mxu0 0.0
    %240 = vmatpush1.msra.mxu0 0.0
    %241 = vmatprep.subr.mxu0 0.0
    %242 = vmatpush1.msra.mxu0 0.0
    %243 = vmatprep.subr.mxu0 0.0
    %244 = vmatpush1.msra.mxu0 0.0
    %245 = vmatprep.subr.mxu0 0.0
    %246 = vmatpush1.msra.mxu0 0.0
    %247 = vmatprep.subr.mxu0 0.0
    %248 = vmatpush1.msra.mxu0 0.0
    %249 = vmatprep.mubr.f32.mxu0 0.0
    %v250 = vand.u32 %v54, 4294901760
    %251 = vmatmul.mubr.f32.gmra.mrb[0].mxu0 %v250
    %v252 = vpop.f32.mrb[0].mxu0
    %v253 = vadd.f32 %v142, %v252
    %v254 = vpop.f32.mrb[0].mxu0
    %255 = vmatprep.mubr.f32.mxu0 0.0
    %v256 = vand.u32 %v57, 4294901760
    %257 = vmatmul.mubr.f32.gmra.mrb[0].mxu0 %v256
    %v258 = vpop.f32.mrb[0].mxu0
    %v259 = vadd.f32 %v152, %v258
    %v260 = vpop.f32.mrb[0].mxu0
    %261 = vmatprep.mubr.f32.mxu0 0.0
    %v262 = vand.u32 %v60, 4294901760
    %263 = vmatmul.mubr.f32.gmra.mrb[0].mxu0 %v262
    %v264 = vpop.f32.mrb[0].mxu0
    %v265 = vadd.f32 %v162, %v264
    %v266 = vpop.f32.mrb[0].mxu0
    %267 = vdwg.mxu0
    %268 = vmatprep.subr.mxu0 0.0
    %v269 = vand.u32 %v30, 4294901760
    %v270 = vsub.f32 %v30, %v269
    %271 = vmatpush1.msra.mxu0 %v270
    %272 = vmatprep.subr.mxu0 0.0
    %v273 = vand.u32 %v31, 4294901760
    %v274 = vsub.f32 %v31, %v273
    %275 = vmatpush1.msra.mxu0 %v274
    %276 = vmatprep.subr.mxu0 0.0
    %v277 = vand.u32 %v32, 4294901760
    %v278 = vsub.f32 %v32, %v277
    %279 = vmatpush1.msra.mxu0 %v278
    %280 = vmatprep.subr.mxu0 0.0
    %v281 = vand.u32 %v64, 4294901760
    %v282 = vsub.f32 %v64, %v281
    %283 = vmatpush1.msra.mxu0 %v282
    %284 = vmatprep.subr.mxu0 0.0
    %285 = vmatpush1.msra.mxu0 0.0
    %286 = vmatprep.subr.mxu0 0.0
    %287 = vmatpush1.msra.mxu0 0.0
    %288 = vmatprep.subr.mxu0 0.0
    %289 = vmatpush1.msra.mxu0 0.0
    %290 = vmatprep.subr.mxu0 0.0
    %291 = vmatpush1.msra.mxu0 0.0
    %292 = vmatprep.subr.mxu0 0.0
    %293 = vmatpush1.msra.mxu0 0.0
    %294 = vmatprep.subr.mxu0 0.0
    %295 = vmatpush1.msra.mxu0 0.0
    %296 = vmatprep.subr.mxu0 0.0
    %297 = vmatpush1.msra.mxu0 0.0
    %298 = vmatprep.subr.mxu0 0.0
    %299 = vmatpush1.msra.mxu0 0.0
    %300 = vmatprep.subr.mxu0 0.0
    %301 = vmatpush1.msra.mxu0 0.0
    %302 = vmatprep.subr.mxu0 0.0
    %303 = vmatpush1.msra.mxu0 0.0
    %304 = vmatprep.subr.mxu0 0.0
    %305 = vmatpush1.msra.mxu0 0.0
    %306 = vmatprep.subr.mxu0 0.0
    %307 = vmatpush1.msra.mxu0 0.0
    %308 = vmatprep.subr.mxu0 0.0
    %309 = vmatpush1.msra.mxu0 0.0
    %310 = vmatprep.subr.mxu0 0.0
    %311 = vmatpush1.msra.mxu0 0.0
    %312 = vmatprep.subr.mxu0 0.0
    %313 = vmatpush1.msra.mxu0 0.0
    %314 = vmatprep.subr.mxu0 0.0
    %315 = vmatpush1.msra.mxu0 0.0
    %316 = vmatprep.subr.mxu0 0.0
    %317 = vmatpush1.msra.mxu0 0.0
    %318 = vmatprep.subr.mxu0 0.0
    %319 = vmatpush1.msra.mxu0 0.0
    %320 = vmatprep.subr.mxu0 0.0
    %321 = vmatpush1.msra.mxu0 0.0
    %322 = vmatprep.subr.mxu0 0.0
    %323 = vmatpush1.msra.mxu0 0.0
    %324 = vmatprep.subr.mxu0 0.0
    %325 = vmatpush1.msra.mxu0 0.0
    %326 = vmatprep.subr.mxu0 0.0
    %327 = vmatpush1.msra.mxu0 0.0
    %328 = vmatprep.subr.mxu0 0.0
    %329 = vmatpush1.msra.mxu0 0.0
    %330 = vmatprep.subr.mxu0 0.0
    %331 = vmatpush1.msra.mxu0 0.0
    %332 = vmatprep.subr.mxu0 0.0
    %333 = vmatpush1.msra.mxu0 0.0
    %334 = vmatprep.subr.mxu0 0.0
    %335 = vmatpush1.msra.mxu0 0.0
    %336 = vmatprep.subr.mxu0 0.0
    %337 = vmatpush1.msra.mxu0 0.0
    %338 = vmatprep.subr.mxu0 0.0
    %339 = vmatpush1.msra.mxu0 0.0
    %340 = vmatprep.mubr.f32.mxu0 0.0
    %v341 = vand.u32 %v54, 4294901760
    %v342 = vsub.f32 %v54, %v341
    %343 = vmatmul.mubr.f32.gmra.mrb[0].mxu0 %v342
    %v344 = vpop.f32.mrb[0].mxu0
    %v345 = vadd.f32 %v253, %v344
    %v346 = vpop.f32.mrb[0].mxu0
    %347 = vmatprep.mubr.f32.mxu0 0.0
    %v348 = vand.u32 %v57, 4294901760
    %v349 = vsub.f32 %v57, %v348
    %350 = vmatmul.mubr.f32.gmra.mrb[0].mxu0 %v349
    %v351 = vpop.f32.mrb[0].mxu0
    %v352 = vadd.f32 %v259, %v351
    %v353 = vpop.f32.mrb[0].mxu0
    %354 = vmatprep.mubr.f32.mxu0 0.0
    %v355 = vand.u32 %v60, 4294901760
    %v356 = vsub.f32 %v60, %v355
    %357 = vmatmul.mubr.f32.gmra.mrb[0].mxu0 %v356
    %v358 = vpop.f32.mrb[0].mxu0
    %v359 = vadd.f32 %v265, %v358
    %v360 = vpop.f32.mrb[0].mxu0
    %361 = vdwg.mxu0
    %362 = vmatprep.subr.mxu0 0.0
    %v363 = vand.u32 %v30, 4294901760
    %364 = vmatpush1.msra.mxu0 %v363
    %365 = vmatprep.subr.mxu0 0.0
    %v366 = vand.u32 %v31, 4294901760
    %367 = vmatpush1.msra.mxu0 %v366
    %368 = vmatprep.subr.mxu0 0.0
    %v369 = vand.u32 %v32, 4294901760
    %370 = vmatpush1.msra.mxu0 %v369
    %371 = vmatprep.subr.mxu0 0.0
    %v372 = vand.u32 %v64, 4294901760
    %373 = vmatpush1.msra.mxu0 %v372
    %374 = vmatprep.subr.mxu0 0.0
    %375 = vmatpush1.msra.mxu0 0.0
    %376 = vmatprep.subr.mxu0 0.0
    %377 = vmatpush1.msra.mxu0 0.0
    %378 = vmatprep.subr.mxu0 0.0
    %379 = vmatpush1.msra.mxu0 0.0
    %380 = vmatprep.subr.mxu0 0.0
    %381 = vmatpush1.msra.mxu0 0.0
    %382 = vmatprep.subr.mxu0 0.0
    %383 = vmatpush1.msra.mxu0 0.0
    %384 = vmatprep.subr.mxu0 0.0
    %385 = vmatpush1.msra.mxu0 0.0
    %386 = vmatprep.subr.mxu0 0.0
    %387 = vmatpush1.msra.mxu0 0.0
    %388 = vmatprep.subr.mxu0 0.0
    %389 = vmatpush1.msra.mxu0 0.0
    %390 = vmatprep.subr.mxu0 0.0
    %391 = vmatpush1.msra.mxu0 0.0
    %392 = vmatprep.subr.mxu0 0.0
    %393 = vmatpush1.msra.mxu0 0.0
    %394 = vmatprep.subr.mxu0 0.0
    %395 = vmatpush1.msra.mxu0 0.0
    %396 = vmatprep.subr.mxu0 0.0
    %397 = vmatpush1.msra.mxu0 0.0
    %398 = vmatprep.subr.mxu0 0.0
    %399 = vmatpush1.msra.mxu0 0.0
    %400 = vmatprep.subr.mxu0 0.0
    %401 = vmatpush1.msra.mxu0 0.0
    %402 = vmatprep.subr.mxu0 0.0
    %403 = vmatpush1.msra.mxu0 0.0
    %404 = vmatprep.subr.mxu0 0.0
    %405 = vmatpush1.msra.mxu0 0.0
    %406 = vmatprep.subr.mxu0 0.0
    %407 = vmatpush1.msra.mxu0 0.0
    %408 = vmatprep.subr.mxu0 0.0
    %409 = vmatpush1.msra.mxu0 0.0
    %410 = vmatprep.subr.mxu0 0.0
    %411 = vmatpush1.msra.mxu0 0.0
    %412 = vmatprep.subr.mxu0 0.0
    %413 = vmatpush1.msra.mxu0 0.0
    %414 = vmatprep.subr.mxu0 0.0
    %415 = vmatpush1.msra.mxu0 0.0
    %416 = vmatprep.subr.mxu0 0.0
    %417 = vmatpush1.msra.mxu0 0.0
    %418 = vmatprep.subr.mxu0 0.0
    %419 = vmatpush1.msra.mxu0 0.0
    %420 = vmatprep.subr.mxu0 0.0
    %421 = vmatpush1.msra.mxu0 0.0
    %422 = vmatprep.subr.mxu0 0.0
    %423 = vmatpush1.msra.mxu0 0.0
    %424 = vmatprep.subr.mxu0 0.0
    %425 = vmatpush1.msra.mxu0 0.0
    %426 = vmatprep.subr.mxu0 0.0
    %427 = vmatpush1.msra.mxu0 0.0
    %428 = vmatprep.subr.mxu0 0.0
    %429 = vmatpush1.msra.mxu0 0.0
    %430 = vmatprep.mubr.f32.mxu0 0.0
    %v431 = vand.u32 %v54, 4294901760
    %v432 = vsub.f32 %v54, %v431
    %v433 = vand.u32 %v432, 4294901760
    %434 = vmatmul.mubr.f32.gmra.mrb[0].mxu0 %v433
    %v435 = vpop.f32.mrb[0].mxu0
    %v436 = vadd.f32 %v345, %v435
    %v437 = vpop.f32.mrb[0].mxu0
    %438 = vmatprep.mubr.f32.mxu0 0.0
    %v439 = vand.u32 %v57, 4294901760
    %v440 = vsub.f32 %v57, %v439
    %v441 = vand.u32 %v440, 4294901760
    %442 = vmatmul.mubr.f32.gmra.mrb[0].mxu0 %v441
    %v443 = vpop.f32.mrb[0].mxu0
    %v444 = vadd.f32 %v352, %v443
    %v445 = vpop.f32.mrb[0].mxu0
    %446 = vmatprep.mubr.f32.mxu0 0.0
    %v447 = vand.u32 %v60, 4294901760
    %v448 = vsub.f32 %v60, %v447
    %v449 = vand.u32 %v448, 4294901760
    %450 = vmatmul.mubr.f32.gmra.mrb[0].mxu0 %v449
    %v451 = vpop.f32.mrb[0].mxu0
    %v452 = vadd.f32 %v359, %v451
    %v453 = vpop.f32.mrb[0].mxu0
    %454 = vdwg.mxu0
    %455 = vmatprep.subr.mxu0 0.0
    %v456 = vand.u32 %v30, 4294901760
    %v457 = vsub.f32 %v30, %v456
    %v458 = vand.u32 %v457, 4294901760
    %459 = vmatpush1.msra.mxu0 %v458
    %460 = vmatprep.subr.mxu0 0.0
    %v461 = vand.u32 %v31, 4294901760
    %v462 = vsub.f32 %v31, %v461
    %v463 = vand.u32 %v462, 4294901760
    %464 = vmatpush1.msra.mxu0 %v463
    %465 = vmatprep.subr.mxu0 0.0
    %v466 = vand.u32 %v32, 4294901760
    %v467 = vsub.f32 %v32, %v466
    %v468 = vand.u32 %v467, 4294901760
    %469 = vmatpush1.msra.mxu0 %v468
    %470 = vmatprep.subr.mxu0 0.0
    %v471 = vand.u32 %v64, 4294901760
    %v472 = vsub.f32 %v64, %v471
    %v473 = vand.u32 %v472, 4294901760
    %474 = vmatpush1.msra.mxu0 %v473
    %475 = vmatprep.subr.mxu0 0.0
    %476 = vmatpush1.msra.mxu0 0.0
    %477 = vmatprep.subr.mxu0 0.0
    %478 = vmatpush1.msra.mxu0 0.0
    %479 = vmatprep.subr.mxu0 0.0
    %480 = vmatpush1.msra.mxu0 0.0
    %481 = vmatprep.subr.mxu0 0.0
    %482 = vmatpush1.msra.mxu0 0.0
    %483 = vmatprep.subr.mxu0 0.0
    %484 = vmatpush1.msra.mxu0 0.0
    %485 = vmatprep.subr.mxu0 0.0
    %486 = vmatpush1.msra.mxu0 0.0
    %487 = vmatprep.subr.mxu0 0.0
    %488 = vmatpush1.msra.mxu0 0.0
    %489 = vmatprep.subr.mxu0 0.0
    %490 = vmatpush1.msra.mxu0 0.0
    %491 = vmatprep.subr.mxu0 0.0
    %492 = vmatpush1.msra.mxu0 0.0
    %493 = vmatprep.subr.mxu0 0.0
    %494 = vmatpush1.msra.mxu0 0.0
    %495 = vmatprep.subr.mxu0 0.0
    %496 = vmatpush1.msra.mxu0 0.0
    %497 = vmatprep.subr.mxu0 0.0
    %498 = vmatpush1.msra.mxu0 0.0
    %499 = vmatprep.subr.mxu0 0.0
    %500 = vmatpush1.msra.mxu0 0.0
    %501 = vmatprep.subr.mxu0 0.0
    %502 = vmatpush1.msra.mxu0 0.0
    %503 = vmatprep.subr.mxu0 0.0
    %504 = vmatpush1.msra.mxu0 0.0
    %505 = vmatprep.subr.mxu0 0.0
    %506 = vmatpush1.msra.mxu0 0.0
    %507 = vmatprep.subr.mxu0 0.0
    %508 = vmatpush1.msra.mxu0 0.0
    %509 = vmatprep.subr.mxu0 0.0
    %510 = vmatpush1.msra.mxu0 0.0
    %511 = vmatprep.subr.mxu0 0.0
    %512 = vmatpush1.msra.mxu0 0.0
    %513 = vmatprep.subr.mxu0 0.0
    %514 = vmatpush1.msra.mxu0 0.0
    %515 = vmatprep.subr.mxu0 0.0
    %516 = vmatpush1.msra.mxu0 0.0
    %517 = vmatprep.subr.mxu0 0.0
    %518 = vmatpush1.msra.mxu0 0.0
    %519 = vmatprep.subr.mxu0 0.0
    %520 = vmatpush1.msra.mxu0 0.0
    %521 = vmatprep.subr.mxu0 0.0
    %522 = vmatpush1.msra.mxu0 0.0
    %523 = vmatprep.subr.mxu0 0.0
    %524 = vmatpush1.msra.mxu0 0.0
    %525 = vmatprep.subr.mxu0 0.0
    %526 = vmatpush1.msra.mxu0 0.0
    %527 = vmatprep.subr.mxu0 0.0
    %528 = vmatpush1.msra.mxu0 0.0
    %529 = vmatprep.subr.mxu0 0.0
    %530 = vmatpush1.msra.mxu0 0.0
    %531 = vmatprep.mubr.f32.mxu0 0.0
    %v532 = vand.u32 %v54, 4294901760
    %533 = vmatmul.mubr.f32.gmra.mrb[0].mxu0 %v532
    %v534 = vpop.f32.mrb[0].mxu0
    %v535 = vadd.f32 %v436, %v534
    %v536 = vpop.f32.mrb[0].mxu0
    %537 = vmatprep.mubr.f32.mxu0 0.0
    %v538 = vand.u32 %v57, 4294901760
    %539 = vmatmul.mubr.f32.gmra.mrb[0].mxu0 %v538
    %v540 = vpop.f32.mrb[0].mxu0
    %v541 = vadd.f32 %v444, %v540
    %v542 = vpop.f32.mrb[0].mxu0
    %543 = vmatprep.mubr.f32.mxu0 0.0
    %v544 = vand.u32 %v60, 4294901760
    %545 = vmatmul.mubr.f32.gmra.mrb[0].mxu0 %v544
    %v546 = vpop.f32.mrb[0].mxu0
    %v547 = vadd.f32 %v452, %v546
    %v548 = vpop.f32.mrb[0].mxu0
    %549 = vdwg.mxu0
    %550 = vmatprep.subr.mxu0 0.0
    %v551 = vand.u32 %v30, 4294901760
    %552 = vmatpush1.msra.mxu0 %v551
    %553 = vmatprep.subr.mxu0 0.0
    %v554 = vand.u32 %v31, 4294901760
    %555 = vmatpush1.msra.mxu0 %v554
    %556 = vmatprep.subr.mxu0 0.0
    %v557 = vand.u32 %v32, 4294901760
    %558 = vmatpush1.msra.mxu0 %v557
    %559 = vmatprep.subr.mxu0 0.0
    %v560 = vand.u32 %v64, 4294901760
    %561 = vmatpush1.msra.mxu0 %v560
    %562 = vmatprep.subr.mxu0 0.0
    %563 = vmatpush1.msra.mxu0 0.0
    %564 = vmatprep.subr.mxu0 0.0
    %565 = vmatpush1.msra.mxu0 0.0
    %566 = vmatprep.subr.mxu0 0.0
    %567 = vmatpush1.msra.mxu0 0.0
    %568 = vmatprep.subr.mxu0 0.0
    %569 = vmatpush1.msra.mxu0 0.0
    %570 = vmatprep.subr.mxu0 0.0
    %571 = vmatpush1.msra.mxu0 0.0
    %572 = vmatprep.subr.mxu0 0.0
    %573 = vmatpush1.msra.mxu0 0.0
    %574 = vmatprep.subr.mxu0 0.0
    %575 = vmatpush1.msra.mxu0 0.0
    %576 = vmatprep.subr.mxu0 0.0
    %577 = vmatpush1.msra.mxu0 0.0
    %578 = vmatprep.subr.mxu0 0.0
    %579 = vmatpush1.msra.mxu0 0.0
    %580 = vmatprep.subr.mxu0 0.0
    %581 = vmatpush1.msra.mxu0 0.0
    %582 = vmatprep.subr.mxu0 0.0
    %583 = vmatpush1.msra.mxu0 0.0
    %584 = vmatprep.subr.mxu0 0.0
    %585 = vmatpush1.msra.mxu0 0.0
    %586 = vmatprep.subr.mxu0 0.0
    %587 = vmatpush1.msra.mxu0 0.0
    %588 = vmatprep.subr.mxu0 0.0
    %589 = vmatpush1.msra.mxu0 0.0
    %590 = vmatprep.subr.mxu0 0.0
    %591 = vmatpush1.msra.mxu0 0.0
    %592 = vmatprep.subr.mxu0 0.0
    %593 = vmatpush1.msra.mxu0 0.0
    %594 = vmatprep.subr.mxu0 0.0
    %595 = vmatpush1.msra.mxu0 0.0
    %596 = vmatprep.subr.mxu0 0.0
    %597 = vmatpush1.msra.mxu0 0.0
    %598 = vmatprep.subr.mxu0 0.0
    %599 = vmatpush1.msra.mxu0 0.0
    %600 = vmatprep.subr.mxu0 0.0
    %601 = vmatpush1.msra.mxu0 0.0
    %602 = vmatprep.subr.mxu0 0.0
    %603 = vmatpush1.msra.mxu0 0.0
    %604 = vmatprep.subr.mxu0 0.0
    %605 = vmatpush1.msra.mxu0 0.0
    %606 = vmatprep.subr.mxu0 0.0
    %607 = vmatpush1.msra.mxu0 0.0
    %608 = vmatprep.subr.mxu0 0.0
    %609 = vmatpush1.msra.mxu0 0.0
    %610 = vmatprep.subr.mxu0 0.0
    %611 = vmatpush1.msra.mxu0 0.0
    %612 = vmatprep.subr.mxu0 0.0
    %613 = vmatpush1.msra.mxu0 0.0
    %614 = vmatprep.subr.mxu0 0.0
    %615 = vmatpush1.msra.mxu0 0.0
    %616 = vmatprep.subr.mxu0 0.0
    %617 = vmatpush1.msra.mxu0 0.0
    %618 = vmatprep.mubr.f32.mxu0 0.0
    %v619 = vand.u32 %v54, 4294901760
    %620 = vmatmul.mubr.f32.gmra.mrb[0].mxu0 %v619
    %v621 = vpop.f32.mrb[0].mxu0
    %v622 = vadd.f32 %v535, %v621
    %v623 = vpop.f32.mrb[0].mxu0
    %624 = vmatprep.mubr.f32.mxu0 0.0
    %v625 = vand.u32 %v57, 4294901760
    %626 = vmatmul.mubr.f32.gmra.mrb[0].mxu0 %v625
    %v627 = vpop.f32.mrb[0].mxu0
    %v628 = vadd.f32 %v541, %v627
    %v629 = vpop.f32.mrb[0].mxu0
    %630 = vmatprep.mubr.f32.mxu0 0.0
    %v631 = vand.u32 %v60, 4294901760
    %632 = vmatmul.mubr.f32.gmra.mrb[0].mxu0 %v631
    %v633 = vpop.f32.mrb[0].mxu0
    %v634 = vadd.f32 %v547, %v633
    %v635 = vpop.f32.mrb[0].mxu0
    %636 = vdwg.mxu0
    %vm637 = vcmp.gt.f32.partialorder %v622, 0.0
    %vm638 = vcmp.gt.f32.partialorder %v628, 0.0
    %vm639 = vcmp.gt.f32.partialorder %v634, 0.0
    %v640 = vmul.f32 %v622, 0.01
    %v641 = vmul.f32 %v628, 0.01
    %v642 = vmul.f32 %v634, 0.01
    %v643 = vsel %vm637, %v622, %v640
    %v644 = vsel %vm638, %v628, %v641
    %v645 = vsel %vm639, %v634, %v642
    %v646 = vld [vmem:[%s3] sm:$0xff]
    %v647 = vld [vmem:[%s3 + $0x8] sm:$0xff]
    %v648 = vld [vmem:[%s3 + $0x10] sm:$0x3f]
    %v649 = vld [vmem:[%s4] sm:$0xff]
    %v650 = vld [vmem:[%s4 + $0x8] sm:$0xff]
    %v651 = vld [vmem:[%s4 + $0x10] sm:$0x3f]
    %653 = vset.pattern.permute.xlu0 0
    %654 = vperm.xlu0 %653, %v649
    %v655 = vpop.permute.xlu0 %654
    %658 = vset.pattern.permute.xlu0 0
    %659 = vperm.xlu0 %658, %v650
    %v660 = vpop.permute.xlu0 %659
    %663 = vset.pattern.permute.xlu0 0
    %664 = vperm.xlu0 %663, %v651
    %v665 = vpop.permute.xlu0 %664
    %vm667 = vcmask 179200
    %v669 = vsel %vm667, %v646, 0
    %v672 = vsel %vm667, %v647, 0
    %v675 = vsel %vm667, %v648, 0
    %vm677 = vcmask 1045504
    %v679 = vsel %vm677, %v645, 0
    %681 = vmatprep.subr.mxu0 0.0
    %v682 = vand.u32 %v643, 4294901760
    %683 = vmatpush1.msra.mxu0 %v682
    %684 = vmatprep.subr.mxu0 0.0
    %v685 = vand.u32 %v644, 4294901760
    %686 = vmatpush1.msra.mxu0 %v685
    %687 = vmatprep.subr.mxu0 0.0
    %v688 = vand.u32 %v679, 4294901760
    %689 = vmatpush1.msra.mxu0 %v688
    %690 = vmatprep.subr.mxu0 0.0
    %691 = vmatpush1.msra.mxu0 0.0
    %692 = vmatprep.subr.mxu0 0.0
    %693 = vmatpush1.msra.mxu0 0.0
    %694 = vmatprep.subr.mxu0 0.0
    %695 = vmatpush1.msra.mxu0 0.0
    %696 = vmatprep.subr.mxu0 0.0
    %697 = vmatpush1.msra.mxu0 0.0
    %698 = vmatprep.subr.mxu0 0.0
    %699 = vmatpush1.msra.mxu0 0.0
    %700 = vmatprep.subr.mxu0 0.0
    %701 = vmatpush1.msra.mxu0 0.0
    %702 = vmatprep.subr.mxu0 0.0
    %703 = vmatpush1.msra.mxu0 0.0
    %704 = vmatprep.subr.mxu0 0.0
    %705 = vmatpush1.msra.mxu0 0.0
    %706 = vmatprep.subr.mxu0 0.0
    %707 = vmatpush1.msra.mxu0 0.0
    %708 = vmatprep.subr.mxu0 0.0
    %709 = vmatpush1.msra.mxu0 0.0
    %710 = vmatprep.subr.mxu0 0.0
    %711 = vmatpush1.msra.mxu0 0.0
    %712 = vmatprep.subr.mxu0 0.0
    %713 = vmatpush1.msra.mxu0 0.0
    %714 = vmatprep.subr.mxu0 0.0
    %715 = vmatpush1.msra.mxu0 0.0
    %716 = vmatprep.subr.mxu0 0.0
    %717 = vmatpush1.msra.mxu0 0.0
    %718 = vmatprep.subr.mxu0 0.0
    %719 = vmatpush1.msra.mxu0 0.0
    %720 = vmatprep.subr.mxu0 0.0
    %721 = vmatpush1.msra.mxu0 0.0
    %722 = vmatprep.subr.mxu0 0.0
    %723 = vmatpush1.msra.mxu0 0.0
    %724 = vmatprep.subr.mxu0 0.0
    %725 = vmatpush1.msra.mxu0 0.0
    %726 = vmatprep.subr.mxu0 0.0
    %727 = vmatpush1.msra.mxu0 0.0
    %728 = vmatprep.subr.mxu0 0.0
    %729 = vmatpush1.msra.mxu0 0.0
    %730 = vmatprep.subr.mxu0 0.0
    %731 = vmatpush1.msra.mxu0 0.0
    %732 = vmatprep.subr.mxu0 0.0
    %733 = vmatpush1.msra.mxu0 0.0
    %734 = vmatprep.subr.mxu0 0.0
    %735 = vmatpush1.msra.mxu0 0.0
    %736 = vmatprep.subr.mxu0 0.0
    %737 = vmatpush1.msra.mxu0 0.0
    %738 = vmatprep.subr.mxu0 0.0
    %739 = vmatpush1.msra.mxu0 0.0
    %740 = vmatprep.subr.mxu0 0.0
    %741 = vmatpush1.msra.mxu0 0.0
    %742 = vmatprep.subr.mxu0 0.0
    %743 = vmatpush1.msra.mxu0 0.0
    %744 = vmatprep.subr.mxu0 0.0
    %745 = vmatpush1.msra.mxu0 0.0
    %746 = vmatprep.subr.mxu0 0.0
    %747 = vmatpush1.msra.mxu0 0.0
    %748 = vmatprep.mubr.f32.mxu0 0.0
    %v749 = vand.u32 %v669, 4294901760
    %v750 = vsub.f32 %v669, %v749
    %v751 = vand.u32 %v750, 4294901760
    %v752 = vsub.f32 %v750, %v751
    %v753 = vand.u32 %v752, 4294901760
    %754 = vmatmul.mubr.f32.gmra.mrb[0].mxu0 %v753
    %v755 = vpop.f32.mrb[0].mxu0
    %v756 = vadd.f32 %v655, %v755
    %v757 = vpop.f32.mrb[0].mxu0
    %758 = vmatprep.mubr.f32.mxu0 0.0
    %v759 = vand.u32 %v672, 4294901760
    %v760 = vsub.f32 %v672, %v759
    %v761 = vand.u32 %v760, 4294901760
    %v762 = vsub.f32 %v760, %v761
    %v763 = vand.u32 %v762, 4294901760
    %764 = vmatmul.mubr.f32.gmra.mrb[0].mxu0 %v763
    %v765 = vpop.f32.mrb[0].mxu0
    %v766 = vadd.f32 %v660, %v765
    %v767 = vpop.f32.mrb[0].mxu0
    %768 = vmatprep.mubr.f32.mxu0 0.0
    %v769 = vand.u32 %v675, 4294901760
    %v770 = vsub.f32 %v675, %v769
    %v771 = vand.u32 %v770, 4294901760
    %v772 = vsub.f32 %v770, %v771
    %v773 = vand.u32 %v772, 4294901760
    %774 = vmatmul.mubr.f32.gmra.mrb[0].mxu0 %v773
    %v775 = vpop.f32.mrb[0].mxu0
    %v776 = vadd.f32 %v665, %v775
    %v777 = vpop.f32.mrb[0].mxu0
    %778 = vdwg.mxu0
    %779 = vmatprep.subr.mxu0 0.0
    %v780 = vand.u32 %v643, 4294901760
    %v781 = vsub.f32 %v643, %v780
    %v782 = vand.u32 %v781, 4294901760
    %v783 = vsub.f32 %v781, %v782
    %v784 = vand.u32 %v783, 4294901760
    %785 = vmatpush1.msra.mxu0 %v784
    %786 = vmatprep.subr.mxu0 0.0
    %v787 = vand.u32 %v644, 4294901760
    %v788 = vsub.f32 %v644, %v787
    %v789 = vand.u32 %v788, 4294901760
    %v790 = vsub.f32 %v788, %v789
    %v791 = vand.u32 %v790, 4294901760
    %792 = vmatpush1.msra.mxu0 %v791
    %793 = vmatprep.subr.mxu0 0.0
    %v794 = vand.u32 %v679, 4294901760
    %v795 = vsub.f32 %v679, %v794
    %v796 = vand.u32 %v795, 4294901760
    %v797 = vsub.f32 %v795, %v796
    %v798 = vand.u32 %v797, 4294901760
    %799 = vmatpush1.msra.mxu0 %v798
    %800 = vmatprep.subr.mxu0 0.0
    %801 = vmatpush1.msra.mxu0 0.0
    %802 = vmatprep.subr.mxu0 0.0
    %803 = vmatpush1.msra.mxu0 0.0
    %804 = vmatprep.subr.mxu0 0.0
    %805 = vmatpush1.msra.mxu0 0.0
    %806 = vmatprep.subr.mxu0 0.0
    %807 = vmatpush1.msra.mxu0 0.0
    %808 = vmatprep.subr.mxu0 0.0
    %809 = vmatpush1.msra.mxu0 0.0
    %810 = vmatprep.subr.mxu0 0.0
    %811 = vmatpush1.msra.mxu0 0.0
    %812 = vmatprep.subr.mxu0 0.0
    %813 = vmatpush1.msra.mxu0 0.0
    %814 = vmatprep.subr.mxu0 0.0
    %815 = vmatpush1.msra.mxu0 0.0
    %816 = vmatprep.subr.mxu0 0.0
    %817 = vmatpush1.msra.mxu0 0.0
    %818 = vmatprep.subr.mxu0 0.0
    %819 = vmatpush1.msra.mxu0 0.0
    %820 = vmatprep.subr.mxu0 0.0
    %821 = vmatpush1.msra.mxu0 0.0
    %822 = vmatprep.subr.mxu0 0.0
    %823 = vmatpush1.msra.mxu0 0.0
    %824 = vmatprep.subr.mxu0 0.0
    %825 = vmatpush1.msra.mxu0 0.0
    %826 = vmatprep.subr.mxu0 0.0
    %827 = vmatpush1.msra.mxu0 0.0
    %828 = vmatprep.subr.mxu0 0.0
    %829 = vmatpush1.msra.mxu0 0.0
    %830 = vmatprep.subr.mxu0 0.0
    %831 = vmatpush1.msra.mxu0 0.0
    %832 = vmatprep.subr.mxu0 0.0
    %833 = vmatpush1.msra.mxu0 0.0
    %834 = vmatprep.subr.mxu0 0.0
    %835 = vmatpush1.msra.mxu0 0.0
    %836 = vmatprep.subr.mxu0 0.0
    %837 = vmatpush1.msra.mxu0 0.0
    %838 = vmatprep.subr.mxu0 0.0
    %839 = vmatpush1.msra.mxu0 0.0
    %840 = vmatprep.subr.mxu0 0.0
    %841 = vmatpush1.msra.mxu0 0.0
    %842 = vmatprep.subr.mxu0 0.0
    %843 = vmatpush1.msra.mxu0 0.0
    %844 = vmatprep.subr.mxu0 0.0
    %845 = vmatpush1.msra.mxu0 0.0
    %846 = vmatprep.subr.mxu0 0.0
    %847 = vmatpush1.msra.mxu0 0.0
    %848 = vmatprep.subr.mxu0 0.0
    %849 = vmatpush1.msra.mxu0 0.0
    %850 = vmatprep.subr.mxu0 0.0
    %851 = vmatpush1.msra.mxu0 0.0
    %852 = vmatprep.subr.mxu0 0.0
    %853 = vmatpush1.msra.mxu0 0.0
    %854 = vmatprep.subr.mxu0 0.0
    %855 = vmatpush1.msra.mxu0 0.0
    %856 = vmatprep.subr.mxu0 0.0
    %857 = vmatpush1.msra.mxu0 0.0
    %858 = vmatprep.mubr.f32.mxu0 0.0
    %v859 = vand.u32 %v669, 4294901760
    %860 = vmatmul.mubr.f32.gmra.mrb[0].mxu0 %v859
    %v861 = vpop.f32.mrb[0].mxu0
    %v862 = vadd.f32 %v756, %v861
    %v863 = vpop.f32.mrb[0].mxu0
    %864 = vmatprep.mubr.f32.mxu0 0.0
    %v865 = vand.u32 %v672, 4294901760
    %866 = vmatmul.mubr.f32.gmra.mrb[0].mxu0 %v865
    %v867 = vpop.f32.mrb[0].mxu0
    %v868 = vadd.f32 %v766, %v867
    %v869 = vpop.f32.mrb[0].mxu0
    %870 = vmatprep.mubr.f32.mxu0 0.0
    %v871 = vand.u32 %v675, 4294901760
    %872 = vmatmul.mubr.f32.gmra.mrb[0].mxu0 %v871
    %v873 = vpop.f32.mrb[0].mxu0
    %v874 = vadd.f32 %v776, %v873
    %v875 = vpop.f32.mrb[0].mxu0
    %876 = vdwg.mxu0
    %877 = vmatprep.subr.mxu0 0.0
    %v878 = vand.u32 %v643, 4294901760
    %v879 = vsub.f32 %v643, %v878
    %880 = vmatpush1.msra.mxu0 %v879
    %881 = vmatprep.subr.mxu0 0.0
    %v882 = vand.u32 %v644, 4294901760
    %v883 = vsub.f32 %v644, %v882
    %884 = vmatpush1.msra.mxu0 %v883
    %885 = vmatprep.subr.mxu0 0.0
    %v886 = vand.u32 %v679, 4294901760
    %v887 = vsub.f32 %v679, %v886
    %888 = vmatpush1.msra.mxu0 %v887
    %889 = vmatprep.subr.mxu0 0.0
    %890 = vmatpush1.msra.mxu0 0.0
    %891 = vmatprep.subr.mxu0 0.0
    %892 = vmatpush1.msra.mxu0 0.0
    %893 = vmatprep.subr.mxu0 0.0
    %894 = vmatpush1.msra.mxu0 0.0
    %895 = vmatprep.subr.mxu0 0.0
    %896 = vmatpush1.msra.mxu0 0.0
    %897 = vmatprep.subr.mxu0 0.0
    %898 = vmatpush1.msra.mxu0 0.0
    %899 = vmatprep.subr.mxu0 0.0
    %900 = vmatpush1.msra.mxu0 0.0
    %901 = vmatprep.subr.mxu0 0.0
    %902 = vmatpush1.msra.mxu0 0.0
    %903 = vmatprep.subr.mxu0 0.0
    %904 = vmatpush1.msra.mxu0 0.0
    %905 = vmatprep.subr.mxu0 0.0
    %906 = vmatpush1.msra.mxu0 0.0
    %907 = vmatprep.subr.mxu0 0.0
    %908 = vmatpush1.msra.mxu0 0.0
    %909 = vmatprep.subr.mxu0 0.0
    %910 = vmatpush1.msra.mxu0 0.0
    %911 = vmatprep.subr.mxu0 0.0
    %912 = vmatpush1.msra.mxu0 0.0
    %913 = vmatprep.subr.mxu0 0.0
    %914 = vmatpush1.msra.mxu0 0.0
    %915 = vmatprep.subr.mxu0 0.0
    %916 = vmatpush1.msra.mxu0 0.0
    %917 = vmatprep.subr.mxu0 0.0
    %918 = vmatpush1.msra.mxu0 0.0
    %919 = vmatprep.subr.mxu0 0.0
    %920 = vmatpush1.msra.mxu0 0.0
    %921 = vmatprep.subr.mxu0 0.0
    %922 = vmatpush1.msra.mxu0 0.0
    %923 = vmatprep.subr.mxu0 0.0
    %924 = vmatpush1.msra.mxu0 0.0
    %925 = vmatprep.subr.mxu0 0.0
    %926 = vmatpush1.msra.mxu0 0.0
    %927 = vmatprep.subr.mxu0 0.0
    %928 = vmatpush1.msra.mxu0 0.0
    %929 = vmatprep.subr.mxu0 0.0
    %930 = vmatpush1.msra.mxu0 0.0
    %931 = vmatprep.subr.mxu0 0.0
    %932 = vmatpush1.msra.mxu0 0.0
    %933 = vmatprep.subr.mxu0 0.0
    %934 = vmatpush1.msra.mxu0 0.0
    %935 = vmatprep.subr.mxu0 0.0
    %936 = vmatpush1.msra.mxu0 0.0
    %937 = vmatprep.subr.mxu0 0.0
    %938 = vmatpush1.msra.mxu0 0.0
    %939 = vmatprep.subr.mxu0 0.0
    %940 = vmatpush1.msra.mxu0 0.0
    %941 = vmatprep.subr.mxu0 0.0
    %942 = vmatpush1.msra.mxu0 0.0
    %943 = vmatprep.subr.mxu0 0.0
    %944 = vmatpush1.msra.mxu0 0.0
    %945 = vmatprep.subr.mxu0 0.0
    %946 = vmatpush1.msra.mxu0 0.0
    %947 = vmatprep.mubr.f32.mxu0 0.0
    %v948 = vand.u32 %v669, 4294901760
    %v949 = vsub.f32 %v669, %v948
    %950 = vmatmul.mubr.f32.gmra.mrb[0].mxu0 %v949
    %v951 = vpop.f32.mrb[0].mxu0
    %v952 = vadd.f32 %v862, %v951
    %v953 = vpop.f32.mrb[0].mxu0
    %954 = vmatprep.mubr.f32.mxu0 0.0
    %v955 = vand.u32 %v672, 4294901760
    %v956 = vsub.f32 %v672, %v955
    %957 = vmatmul.mubr.f32.gmra.mrb[0].mxu0 %v956
    %v958 = vpop.f32.mrb[0].mxu0
    %v959 = vadd.f32 %v868, %v958
    %v960 = vpop.f32.mrb[0].mxu0
    %961 = vmatprep.mubr.f32.mxu0 0.0
    %v962 = vand.u32 %v675, 4294901760
    %v963 = vsub.f32 %v675, %v962
    %964 = vmatmul.mubr.f32.gmra.mrb[0].mxu0 %v963
    %v965 = vpop.f32.mrb[0].mxu0
    %v966 = vadd.f32 %v874, %v965
    %v967 = vpop.f32.mrb[0].mxu0
    %968 = vdwg.mxu0
    %969 = vmatprep.subr.mxu0 0.0
    %v970 = vand.u32 %v643, 4294901760
    %971 = vmatpush1.msra.mxu0 %v970
    %972 = vmatprep.subr.mxu0 0.0
    %v973 = vand.u32 %v644, 4294901760
    %974 = vmatpush1.msra.mxu0 %v973
    %975 = vmatprep.subr.mxu0 0.0
    %v976 = vand.u32 %v679, 4294901760
    %977 = vmatpush1.msra.mxu0 %v976
    %978 = vmatprep.subr.mxu0 0.0
    %979 = vmatpush1.msra.mxu0 0.0
    %980 = vmatprep.subr.mxu0 0.0
    %981 = vmatpush1.msra.mxu0 0.0
    %982 = vmatprep.subr.mxu0 0.0
    %983 = vmatpush1.msra.mxu0 0.0
    %984 = vmatprep.subr.mxu0 0.0
    %985 = vmatpush1.msra.mxu0 0.0
    %986 = vmatprep.subr.mxu0 0.0
    %987 = vmatpush1.msra.mxu0 0.0
    %988 = vmatprep.subr.mxu0 0.0
    %989 = vmatpush1.msra.mxu0 0.0
    %990 = vmatprep.subr.mxu0 0.0
    %991 = vmatpush1.msra.mxu0 0.0
    %992 = vmatprep.subr.mxu0 0.0
    %993 = vmatpush1.msra.mxu0 0.0
    %994 = vmatprep.subr.mxu0 0.0
    %995 = vmatpush1.msra.mxu0 0.0
    %996 = vmatprep.subr.mxu0 0.0
    %997 = vmatpush1.msra.mxu0 0.0
    %998 = vmatprep.subr.mxu0 0.0
    %999 = vmatpush1.msra.mxu0 0.0
    %1000 = vmatprep.subr.mxu0 0.0
    %1001 = vmatpush1.msra.mxu0 0.0
    %1002 = vmatprep.subr.mxu0 0.0
    %1003 = vmatpush1.msra.mxu0 0.0
    %1004 = vmatprep.subr.mxu0 0.0
    %1005 = vmatpush1.msra.mxu0 0.0
    %1006 = vmatprep.subr.mxu0 0.0
    %1007 = vmatpush1.msra.mxu0 0.0
    %1008 = vmatprep.subr.mxu0 0.0
    %1009 = vmatpush1.msra.mxu0 0.0
    %1010 = vmatprep.subr.mxu0 0.0
    %1011 = vmatpush1.msra.mxu0 0.0
    %1012 = vmatprep.subr.mxu0 0.0
    %1013 = vmatpush1.msra.mxu0 0.0
    %1014 = vmatprep.subr.mxu0 0.0
    %1015 = vmatpush1.msra.mxu0 0.0
    %1016 = vmatprep.subr.mxu0 0.0
    %1017 = vmatpush1.msra.mxu0 0.0
    %1018 = vmatprep.subr.mxu0 0.0
    %1019 = vmatpush1.msra.mxu0 0.0
    %1020 = vmatprep.subr.mxu0 0.0
    %1021 = vmatpush1.msra.mxu0 0.0
    %1022 = vmatprep.subr.mxu0 0.0
    %1023 = vmatpush1.msra.mxu0 0.0
    %1024 = vmatprep.subr.mxu0 0.0
    %1025 = vmatpush1.msra.mxu0 0.0
    %1026 = vmatprep.subr.mxu0 0.0
    %1027 = vmatpush1.msra.mxu0 0.0
    %1028 = vmatprep.subr.mxu0 0.0
    %1029 = vmatpush1.msra.mxu0 0.0
    %1030 = vmatprep.subr.mxu0 0.0
    %1031 = vmatpush1.msra.mxu0 0.0
    %1032 = vmatprep.subr.mxu0 0.0
    %1033 = vmatpush1.msra.mxu0 0.0
    %1034 = vmatprep.subr.mxu0 0.0
    %1035 = vmatpush1.msra.mxu0 0.0
    %1036 = vmatprep.mubr.f32.mxu0 0.0
    %v1037 = vand.u32 %v669, 4294901760
    %v1038 = vsub.f32 %v669, %v1037
    %v1039 = vand.u32 %v1038, 4294901760
    %1040 = vmatmul.mubr.f32.gmra.mrb[0].mxu0 %v1039
    %v1041 = vpop.f32.mrb[0].mxu0
    %v1042 = vadd.f32 %v952, %v1041
    %v1043 = vpop.f32.mrb[0].mxu0
    %1044 = vmatprep.mubr.f32.mxu0 0.0
    %v1045 = vand.u32 %v672, 4294901760
    %v1046 = vsub.f32 %v672, %v1045
    %v1047 = vand.u32 %v1046, 4294901760
    %1048 = vmatmul.mubr.f32.gmra.mrb[0].mxu0 %v1047
    %v1049 = vpop.f32.mrb[0].mxu0
    %v1050 = vadd.f32 %v959, %v1049
    %v1051 = vpop.f32.mrb[0].mxu0
    %1052 = vmatprep.mubr.f32.mxu0 0.0
    %v1053 = vand.u32 %v675, 4294901760
    %v1054 = vsub.f32 %v675, %v1053
    %v1055 = vand.u32 %v1054, 4294901760
    %1056 = vmatmul.mubr.f32.gmra.mrb[0].mxu0 %v1055
    %v1057 = vpop.f32.mrb[0].mxu0
    %v1058 = vadd.f32 %v966, %v1057
    %v1059 = vpop.f32.mrb[0].mxu0
    %1060 = vdwg.mxu0
    %1061 = vmatprep.subr.mxu0 0.0
    %v1062 = vand.u32 %v643, 4294901760
    %v1063 = vsub.f32 %v643, %v1062
    %v1064 = vand.u32 %v1063, 4294901760
    %1065 = vmatpush1.msra.mxu0 %v1064
    %1066 = vmatprep.subr.mxu0 0.0
    %v1067 = vand.u32 %v644, 4294901760
    %v1068 = vsub.f32 %v644, %v1067
    %v1069 = vand.u32 %v1068, 4294901760
    %1070 = vmatpush1.msra.mxu0 %v1069
    %1071 = vmatprep.subr.mxu0 0.0
    %v1072 = vand.u32 %v679, 4294901760
    %v1073 = vsub.f32 %v679, %v1072
    %v1074 = vand.u32 %v1073, 4294901760
    %1075 = vmatpush1.msra.mxu0 %v1074
    %1076 = vmatprep.subr.mxu0 0.0
    %1077 = vmatpush1.msra.mxu0 0.0
    %1078 = vmatprep.subr.mxu0 0.0
    %1079 = vmatpush1.msra.mxu0 0.0
    %1080 = vmatprep.subr.mxu0 0.0
    %1081 = vmatpush1.msra.mxu0 0.0
    %1082 = vmatprep.subr.mxu0 0.0
    %1083 = vmatpush1.msra.mxu0 0.0
    %1084 = vmatprep.subr.mxu0 0.0
    %1085 = vmatpush1.msra.mxu0 0.0
    %1086 = vmatprep.subr.mxu0 0.0
    %1087 = vmatpush1.msra.mxu0 0.0
    %1088 = vmatprep.subr.mxu0 0.0
    %1089 = vmatpush1.msra.mxu0 0.0
    %1090 = vmatprep.subr.mxu0 0.0
    %1091 = vmatpush1.msra.mxu0 0.0
    %1092 = vmatprep.subr.mxu0 0.0
    %1093 = vmatpush1.msra.mxu0 0.0
    %1094 = vmatprep.subr.mxu0 0.0
    %1095 = vmatpush1.msra.mxu0 0.0
    %1096 = vmatprep.subr.mxu0 0.0
    %1097 = vmatpush1.msra.mxu0 0.0
    %1098 = vmatprep.subr.mxu0 0.0
    %1099 = vmatpush1.msra.mxu0 0.0
    %1100 = vmatprep.subr.mxu0 0.0
    %1101 = vmatpush1.msra.mxu0 0.0
    %1102 = vmatprep.subr.mxu0 0.0
    %1103 = vmatpush1.msra.mxu0 0.0
    %1104 = vmatprep.subr.mxu0 0.0
    %1105 = vmatpush1.msra.mxu0 0.0
    %1106 = vmatprep.subr.mxu0 0.0
    %1107 = vmatpush1.msra.mxu0 0.0
    %1108 = vmatprep.subr.mxu0 0.0
    %1109 = vmatpush1.msra.mxu0 0.0
    %1110 = vmatprep.subr.mxu0 0.0
    %1111 = vmatpush1.msra.mxu0 0.0
    %1112 = vmatprep.subr.mxu0 0.0
    %1113 = vmatpush1.msra.mxu0 0.0
    %1114 = vmatprep.subr.mxu0 0.0
    %1115 = vmatpush1.msra.mxu0 0.0
    %1116 = vmatprep.subr.mxu0 0.0
    %1117 = vmatpush1.msra.mxu0 0.0
    %1118 = vmatprep.subr.mxu0 0.0
    %1119 = vmatpush1.msra.mxu0 0.0
    %1120 = vmatprep.subr.mxu0 0.0
    %1121 = vmatpush1.msra.mxu0 0.0
    %1122 = vmatprep.subr.mxu0 0.0
    %1123 = vmatpush1.msra.mxu0 0.0
    %1124 = vmatprep.subr.mxu0 0.0
    %1125 = vmatpush1.msra.mxu0 0.0
    %1126 = vmatprep.subr.mxu0 0.0
    %1127 = vmatpush1.msra.mxu0 0.0
    %1128 = vmatprep.subr.mxu0 0.0
    %1129 = vmatpush1.msra.mxu0 0.0
    %1130 = vmatprep.subr.mxu0 0.0
    %1131 = vmatpush1.msra.mxu0 0.0
    %1132 = vmatprep.subr.mxu0 0.0
    %1133 = vmatpush1.msra.mxu0 0.0
    %1134 = vmatprep.mubr.f32.mxu0 0.0
    %v1135 = vand.u32 %v669, 4294901760
    %1136 = vmatmul.mubr.f32.gmra.mrb[0].mxu0 %v1135
    %v1137 = vpop.f32.mrb[0].mxu0
    %v1138 = vadd.f32 %v1042, %v1137
    %v1139 = vpop.f32.mrb[0].mxu0
    %1140 = vmatprep.mubr.f32.mxu0 0.0
    %v1141 = vand.u32 %v672, 4294901760
    %1142 = vmatmul.mubr.f32.gmra.mrb[0].mxu0 %v1141
    %v1143 = vpop.f32.mrb[0].mxu0
    %v1144 = vadd.f32 %v1050, %v1143
    %v1145 = vpop.f32.mrb[0].mxu0
    %1146 = vmatprep.mubr.f32.mxu0 0.0
    %v1147 = vand.u32 %v675, 4294901760
    %1148 = vmatmul.mubr.f32.gmra.mrb[0].mxu0 %v1147
    %v1149 = vpop.f32.mrb[0].mxu0
    %v1150 = vadd.f32 %v1058, %v1149
    %v1151 = vpop.f32.mrb[0].mxu0
    %1152 = vdwg.mxu0
    %1153 = vmatprep.subr.mxu0 0.0
    %v1154 = vand.u32 %v643, 4294901760
    %1155 = vmatpush1.msra.mxu0 %v1154
    %1156 = vmatprep.subr.mxu0 0.0
    %v1157 = vand.u32 %v644, 4294901760
    %1158 = vmatpush1.msra.mxu0 %v1157
    %1159 = vmatprep.subr.mxu0 0.0
    %v1160 = vand.u32 %v679, 4294901760
    %1161 = vmatpush1.msra.mxu0 %v1160
    %1162 = vmatprep.subr.mxu0 0.0
    %1163 = vmatpush1.msra.mxu0 0.0
    %1164 = vmatprep.subr.mxu0 0.0
    %1165 = vmatpush1.msra.mxu0 0.0
    %1166 = vmatprep.subr.mxu0 0.0
    %1167 = vmatpush1.msra.mxu0 0.0
    %1168 = vmatprep.subr.mxu0 0.0
    %1169 = vmatpush1.msra.mxu0 0.0
    %1170 = vmatprep.subr.mxu0 0.0
    %1171 = vmatpush1.msra.mxu0 0.0
    %1172 = vmatprep.subr.mxu0 0.0
    %1173 = vmatpush1.msra.mxu0 0.0
    %1174 = vmatprep.subr.mxu0 0.0
    %1175 = vmatpush1.msra.mxu0 0.0
    %1176 = vmatprep.subr.mxu0 0.0
    %1177 = vmatpush1.msra.mxu0 0.0
    %1178 = vmatprep.subr.mxu0 0.0
    %1179 = vmatpush1.msra.mxu0 0.0
    %1180 = vmatprep.subr.mxu0 0.0
    %1181 = vmatpush1.msra.mxu0 0.0
    %1182 = vmatprep.subr.mxu0 0.0
    %1183 = vmatpush1.msra.mxu0 0.0
    %1184 = vmatprep.subr.mxu0 0.0
    %1185 = vmatpush1.msra.mxu0 0.0
    %1186 = vmatprep.subr.mxu0 0.0
    %1187 = vmatpush1.msra.mxu0 0.0
    %1188 = vmatprep.subr.mxu0 0.0
    %1189 = vmatpush1.msra.mxu0 0.0
    %1190 = vmatprep.subr.mxu0 0.0
    %1191 = vmatpush1.msra.mxu0 0.0
    %1192 = vmatprep.subr.mxu0 0.0
    %1193 = vmatpush1.msra.mxu0 0.0
    %1194 = vmatprep.subr.mxu0 0.0
    %1195 = vmatpush1.msra.mxu0 0.0
    %1196 = vmatprep.subr.mxu0 0.0
    %1197 = vmatpush1.msra.mxu0 0.0
    %1198 = vmatprep.subr.mxu0 0.0
    %1199 = vmatpush1.msra.mxu0 0.0
    %1200 = vmatprep.subr.mxu0 0.0
    %1201 = vmatpush1.msra.mxu0 0.0
    %1202 = vmatprep.subr.mxu0 0.0
    %1203 = vmatpush1.msra.mxu0 0.0
    %1204 = vmatprep.subr.mxu0 0.0
    %1205 = vmatpush1.msra.mxu0 0.0
    %1206 = vmatprep.subr.mxu0 0.0
    %1207 = vmatpush1.msra.mxu0 0.0
    %1208 = vmatprep.subr.mxu0 0.0
    %1209 = vmatpush1.msra.mxu0 0.0
    %1210 = vmatprep.subr.mxu0 0.0
    %1211 = vmatpush1.msra.mxu0 0.0
    %1212 = vmatprep.subr.mxu0 0.0
    %1213 = vmatpush1.msra.mxu0 0.0
    %1214 = vmatprep.subr.mxu0 0.0
    %1215 = vmatpush1.msra.mxu0 0.0
    %1216 = vmatprep.subr.mxu0 0.0
    %1217 = vmatpush1.msra.mxu0 0.0
    %1218 = vmatprep.subr.mxu0 0.0
    %1219 = vmatpush1.msra.mxu0 0.0
    %1220 = vmatprep.mubr.f32.mxu0 0.0
    %v1221 = vand.u32 %v669, 4294901760
    %1222 = vmatmul.mubr.f32.gmra.mrb[0].mxu0 %v1221
    %v1223 = vpop.f32.mrb[0].mxu0
    %v1224 = vadd.f32 %v1138, %v1223
    %v1225 = vpop.f32.mrb[0].mxu0
    %1226 = vmatprep.mubr.f32.mxu0 0.0
    %v1227 = vand.u32 %v672, 4294901760
    %1228 = vmatmul.mubr.f32.gmra.mrb[0].mxu0 %v1227
    %v1229 = vpop.f32.mrb[0].mxu0
    %v1230 = vadd.f32 %v1144, %v1229
    %v1231 = vpop.f32.mrb[0].mxu0
    %1232 = vmatprep.mubr.f32.mxu0 0.0
    %v1233 = vand.u32 %v675, 4294901760
    %1234 = vmatmul.mubr.f32.gmra.mrb[0].mxu0 %v1233
    %v1235 = vpop.f32.mrb[0].mxu0
    %v1236 = vadd.f32 %v1150, %v1235
    %v1237 = vpop.f32.mrb[0].mxu0
    %1238 = vdwg.mxu0
    %v1239 = vmax.f32 %v1224, 0.0
    %v1240 = vmax.f32 %v1230, 0.0
    %v1241 = vmax.f32 %v1236, 0.0
    %v1242 = vld [vmem:[%s5] sm:$0x7]
    %v1243 = vld [vmem:[%s6] sm:$0x7]
    %1245 = vset.pattern.permute.xlu0 0
    %1246 = vperm.xlu0 %1245, %v1243
    %v1247 = vpop.permute.xlu0 %1246
    %v1250 = vsel %vm667, %v1242, 0
    %v1253 = vsel %vm677, %v1241, 0
    %1255 = vmatprep.subr.mxu0 0.0
    %v1256 = vand.u32 %v1239, 4294901760
    %1257 = vmatpush1.msra.mxu0 %v1256
    %1258 = vmatprep.subr.mxu0 0.0
    %v1259 = vand.u32 %v1240, 4294901760
    %1260 = vmatpush1.msra.mxu0 %v1259
    %1261 = vmatprep.subr.mxu0 0.0
    %v1262 = vand.u32 %v1253, 4294901760
    %1263 = vmatpush1.msra.mxu0 %v1262
    %1264 = vmatprep.subr.mxu0 0.0
    %1265 = vmatpush1.msra.mxu0 0.0
    %1266 = vmatprep.subr.mxu0 0.0
    %1267 = vmatpush1.msra.mxu0 0.0
    %1268 = vmatprep.subr.mxu0 0.0
    %1269 = vmatpush1.msra.mxu0 0.0
    %1270 = vmatprep.subr.mxu0 0.0
    %1271 = vmatpush1.msra.mxu0 0.0
    %1272 = vmatprep.subr.mxu0 0.0
    %1273 = vmatpush1.msra.mxu0 0.0
    %1274 = vmatprep.subr.mxu0 0.0
    %1275 = vmatpush1.msra.mxu0 0.0
    %1276 = vmatprep.subr.mxu0 0.0
    %1277 = vmatpush1.msra.mxu0 0.0
    %1278 = vmatprep.subr.mxu0 0.0
    %1279 = vmatpush1.msra.mxu0 0.0
    %1280 = vmatprep.subr.mxu0 0.0
    %1281 = vmatpush1.msra.mxu0 0.0
    %1282 = vmatprep.subr.mxu0 0.0
    %1283 = vmatpush1.msra.mxu0 0.0
    %1284 = vmatprep.subr.mxu0 0.0
    %1285 = vmatpush1.msra.mxu0 0.0
    %1286 = vmatprep.subr.mxu0 0.0
    %1287 = vmatpush1.msra.mxu0 0.0
    %1288 = vmatprep.subr.mxu0 0.0
    %1289 = vmatpush1.msra.mxu0 0.0
    %1290 = vmatprep.subr.mxu0 0.0
    %1291 = vmatpush1.msra.mxu0 0.0
    %1292 = vmatprep.subr.mxu0 0.0
    %1293 = vmatpush1.msra.mxu0 0.0
    %1294 = vmatprep.subr.mxu0 0.0
    %1295 = vmatpush1.msra.mxu0 0.0
    %1296 = vmatprep.subr.mxu0 0.0
    %1297 = vmatpush1.msra.mxu0 0.0
    %1298 = vmatprep.subr.mxu0 0.0
    %1299 = vmatpush1.msra.mxu0 0.0
    %1300 = vmatprep.subr.mxu0 0.0
    %1301 = vmatpush1.msra.mxu0 0.0
    %1302 = vmatprep.subr.mxu0 0.0
    %1303 = vmatpush1.msra.mxu0 0.0
    %1304 = vmatprep.subr.mxu0 0.0
    %1305 = vmatpush1.msra.mxu0 0.0
    %1306 = vmatprep.subr.mxu0 0.0
    %1307 = vmatpush1.msra.mxu0 0.0
    %1308 = vmatprep.subr.mxu0 0.0
    %1309 = vmatpush1.msra.mxu0 0.0
    %1310 = vmatprep.subr.mxu0 0.0
    %1311 = vmatpush1.msra.mxu0 0.0
    %1312 = vmatprep.subr.mxu0 0.0
    %1313 = vmatpush1.msra.mxu0 0.0
    %1314 = vmatprep.subr.mxu0 0.0
    %1315 = vmatpush1.msra.mxu0 0.0
    %1316 = vmatprep.subr.mxu0 0.0
    %1317 = vmatpush1.msra.mxu0 0.0
    %1318 = vmatprep.subr.mxu0 0.0
    %1319 = vmatpush1.msra.mxu0 0.0
    %1320 = vmatprep.subr.mxu0 0.0
    %1321 = vmatpush1.msra.mxu0 0.0
    %1322 = vmatprep.mubr.f32.mxu0 0.0
    %v1323 = vand.u32 %v1250, 4294901760
    %v1324 = vsub.f32 %v1250, %v1323
    %v1325 = vand.u32 %v1324, 4294901760
    %v1326 = vsub.f32 %v1324, %v1325
    %v1327 = vand.u32 %v1326, 4294901760
    %1328 = vmatmul.mubr.f32.gmra.mrb[0].mxu0 %v1327
    %v1329 = vpop.f32.mrb[0].mxu0
    %v1330 = vadd.f32 %v1247, %v1329
    %v1331 = vpop.f32.mrb[0].mxu0
    %1332 = vdwg.mxu0
    %1333 = vmatprep.subr.mxu0 0.0
    %v1334 = vand.u32 %v1239, 4294901760
    %v1335 = vsub.f32 %v1239, %v1334
    %v1336 = vand.u32 %v1335, 4294901760
    %v1337 = vsub.f32 %v1335, %v1336
    %v1338 = vand.u32 %v1337, 4294901760
    %1339 = vmatpush1.msra.mxu0 %v1338
    %1340 = vmatprep.subr.mxu0 0.0
    %v1341 = vand.u32 %v1240, 4294901760
    %v1342 = vsub.f32 %v1240, %v1341
    %v1343 = vand.u32 %v1342, 4294901760
    %v1344 = vsub.f32 %v1342, %v1343
    %v1345 = vand.u32 %v1344, 4294901760
    %1346 = vmatpush1.msra.mxu0 %v1345
    %1347 = vmatprep.subr.mxu0 0.0
    %v1348 = vand.u32 %v1253, 4294901760
    %v1349 = vsub.f32 %v1253, %v1348
    %v1350 = vand.u32 %v1349, 4294901760
    %v1351 = vsub.f32 %v1349, %v1350
    %v1352 = vand.u32 %v1351, 4294901760
    %1353 = vmatpush1.msra.mxu0 %v1352
    %1354 = vmatprep.subr.mxu0 0.0
    %1355 = vmatpush1.msra.mxu0 0.0
    %1356 = vmatprep.subr.mxu0 0.0
    %1357 = vmatpush1.msra.mxu0 0.0
    %1358 = vmatprep.subr.mxu0 0.0
    %1359 = vmatpush1.msra.mxu0 0.0
    %1360 = vmatprep.subr.mxu0 0.0
    %1361 = vmatpush1.msra.mxu0 0.0
    %1362 = vmatprep.subr.mxu0 0.0
    %1363 = vmatpush1.msra.mxu0 0.0
    %1364 = vmatprep.subr.mxu0 0.0
    %1365 = vmatpush1.msra.mxu0 0.0
    %1366 = vmatprep.subr.mxu0 0.0
    %1367 = vmatpush1.msra.mxu0 0.0
    %1368 = vmatprep.subr.mxu0 0.0
    %1369 = vmatpush1.msra.mxu0 0.0
    %1370 = vmatprep.subr.mxu0 0.0
    %1371 = vmatpush1.msra.mxu0 0.0
    %1372 = vmatprep.subr.mxu0 0.0
    %1373 = vmatpush1.msra.mxu0 0.0
    %1374 = vmatprep.subr.mxu0 0.0
    %1375 = vmatpush1.msra.mxu0 0.0
    %1376 = vmatprep.subr.mxu0 0.0
    %1377 = vmatpush1.msra.mxu0 0.0
    %1378 = vmatprep.subr.mxu0 0.0
    %1379 = vmatpush1.msra.mxu0 0.0
    %1380 = vmatprep.subr.mxu0 0.0
    %1381 = vmatpush1.msra.mxu0 0.0
    %1382 = vmatprep.subr.mxu0 0.0
    %1383 = vmatpush1.msra.mxu0 0.0
    %1384 = vmatprep.subr.mxu0 0.0
    %1385 = vmatpush1.msra.mxu0 0.0
    %1386 = vmatprep.subr.mxu0 0.0
    %1387 = vmatpush1.msra.mxu0 0.0
    %1388 = vmatprep.subr.mxu0 0.0
    %1389 = vmatpush1.msra.mxu0 0.0
    %1390 = vmatprep.subr.mxu0 0.0
    %1391 = vmatpush1.msra.mxu0 0.0
    %1392 = vmatprep.subr.mxu0 0.0
    %1393 = vmatpush1.msra.mxu0 0.0
    %1394 = vmatprep.subr.mxu0 0.0
    %1395 = vmatpush1.msra.mxu0 0.0
    %1396 = vmatprep.subr.mxu0 0.0
    %1397 = vmatpush1.msra.mxu0 0.0
    %1398 = vmatprep.subr.mxu0 0.0
    %1399 = vmatpush1.msra.mxu0 0.0
    %1400 = vmatprep.subr.mxu0 0.0
    %1401 = vmatpush1.msra.mxu0 0.0
    %1402 = vmatprep.subr.mxu0 0.0
    %1403 = vmatpush1.msra.mxu0 0.0
    %1404 = vmatprep.subr.mxu0 0.0
    %1405 = vmatpush1.msra.mxu0 0.0
    %1406 = vmatprep.subr.mxu0 0.0
    %1407 = vmatpush1.msra.mxu0 0.0
    %1408 = vmatprep.subr.mxu0 0.0
    %1409 = vmatpush1.msra.mxu0 0.0
    %1410 = vmatprep.subr.mxu0 0.0
    %1411 = vmatpush1.msra.mxu0 0.0
    %1412 = vmatprep.mubr.f32.mxu0 0.0
    %v1413 = vand.u32 %v1250, 4294901760
    %1414 = vmatmul.mubr.f32.gmra.mrb[0].mxu0 %v1413
    %v1415 = vpop.f32.mrb[0].mxu0
    %v1416 = vadd.f32 %v1330, %v1415
    %v1417 = vpop.f32.mrb[0].mxu0
    %1418 = vdwg.mxu0
    %1419 = vmatprep.subr.mxu0 0.0
    %v1420 = vand.u32 %v1239, 4294901760
    %v1421 = vsub.f32 %v1239, %v1420
    %1422 = vmatpush1.msra.mxu0 %v1421
    %1423 = vmatprep.subr.mxu0 0.0
    %v1424 = vand.u32 %v1240, 4294901760
    %v1425 = vsub.f32 %v1240, %v1424
    %1426 = vmatpush1.msra.mxu0 %v1425
    %1427 = vmatprep.subr.mxu0 0.0
    %v1428 = vand.u32 %v1253, 4294901760
    %v1429 = vsub.f32 %v1253, %v1428
    %1430 = vmatpush1.msra.mxu0 %v1429
    %1431 = vmatprep.subr.mxu0 0.0
    %1432 = vmatpush1.msra.mxu0 0.0
    %1433 = vmatprep.subr.mxu0 0.0
    %1434 = vmatpush1.msra.mxu0 0.0
    %1435 = vmatprep.subr.mxu0 0.0
    %1436 = vmatpush1.msra.mxu0 0.0
    %1437 = vmatprep.subr.mxu0 0.0
    %1438 = vmatpush1.msra.mxu0 0.0
    %1439 = vmatprep.subr.mxu0 0.0
    %1440 = vmatpush1.msra.mxu0 0.0
    %1441 = vmatprep.subr.mxu0 0.0
    %1442 = vmatpush1.msra.mxu0 0.0
    %1443 = vmatprep.subr.mxu0 0.0
    %1444 = vmatpush1.msra.mxu0 0.0
    %1445 = vmatprep.subr.mxu0 0.0
    %1446 = vmatpush1.msra.mxu0 0.0
    %1447 = vmatprep.subr.mxu0 0.0
    %1448 = vmatpush1.msra.mxu0 0.0
    %1449 = vmatprep.subr.mxu0 0.0
    %1450 = vmatpush1.msra.mxu0 0.0
    %1451 = vmatprep.subr.mxu0 0.0
    %1452 = vmatpush1.msra.mxu0 0.0
    %1453 = vmatprep.subr.mxu0 0.0
    %1454 = vmatpush1.msra.mxu0 0.0
    %1455 = vmatprep.subr.mxu0 0.0
    %1456 = vmatpush1.msra.mxu0 0.0
    %1457 = vmatprep.subr.mxu0 0.0
    %1458 = vmatpush1.msra.mxu0 0.0
    %1459 = vmatprep.subr.mxu0 0.0
    %1460 = vmatpush1.msra.mxu0 0.0
    %1461 = vmatprep.subr.mxu0 0.0
    %1462 = vmatpush1.msra.mxu0 0.0
    %1463 = vmatprep.subr.mxu0 0.0
    %1464 = vmatpush1.msra.mxu0 0.0
    %1465 = vmatprep.subr.mxu0 0.0
    %1466 = vmatpush1.msra.mxu0 0.0
    %1467 = vmatprep.subr.mxu0 0.0
    %1468 = vmatpush1.msra.mxu0 0.0
    %1469 = vmatprep.subr.mxu0 0.0
    %1470 = vmatpush1.msra.mxu0 0.0
    %1471 = vmatprep.subr.mxu0 0.0
    %1472 = vmatpush1.msra.mxu0 0.0
    %1473 = vmatprep.subr.mxu0 0.0
    %1474 = vmatpush1.msra.mxu0 0.0
    %1475 = vmatprep.subr.mxu0 0.0
    %1476 = vmatpush1.msra.mxu0 0.0
    %1477 = vmatprep.subr.mxu0 0.0
    %1478 = vmatpush1.msra.mxu0 0.0
    %1479 = vmatprep.subr.mxu0 0.0
    %1480 = vmatpush1.msra.mxu0 0.0
    %1481 = vmatprep.subr.mxu0 0.0
    %1482 = vmatpush1.msra.mxu0 0.0
    %1483 = vmatprep.subr.mxu0 0.0
    %1484 = vmatpush1.msra.mxu0 0.0
    %1485 = vmatprep.subr.mxu0 0.0
    %1486 = vmatpush1.msra.mxu0 0.0
    %1487 = vmatprep.subr.mxu0 0.0
    %1488 = vmatpush1.msra.mxu0 0.0
    %1489 = vmatprep.mubr.f32.mxu0 0.0
    %v1490 = vand.u32 %v1250, 4294901760
    %v1491 = vsub.f32 %v1250, %v1490
    %1492 = vmatmul.mubr.f32.gmra.mrb[0].mxu0 %v1491
    %v1493 = vpop.f32.mrb[0].mxu0
    %v1494 = vadd.f32 %v1416, %v1493
    %v1495 = vpop.f32.mrb[0].mxu0
    %1496 = vdwg.mxu0
    %1497 = vmatprep.subr.mxu0 0.0
    %v1498 = vand.u32 %v1239, 4294901760
    %1499 = vmatpush1.msra.mxu0 %v1498
    %1500 = vmatprep.subr.mxu0 0.0
    %v1501 = vand.u32 %v1240, 4294901760
    %1502 = vmatpush1.msra.mxu0 %v1501
    %1503 = vmatprep.subr.mxu0 0.0
    %v1504 = vand.u32 %v1253, 4294901760
    %1505 = vmatpush1.msra.mxu0 %v1504
    %1506 = vmatprep.subr.mxu0 0.0
    %1507 = vmatpush1.msra.mxu0 0.0
    %1508 = vmatprep.subr.mxu0 0.0
    %1509 = vmatpush1.msra.mxu0 0.0
    %1510 = vmatprep.subr.mxu0 0.0
    %1511 = vmatpush1.msra.mxu0 0.0
    %1512 = vmatprep.subr.mxu0 0.0
    %1513 = vmatpush1.msra.mxu0 0.0
    %1514 = vmatprep.subr.mxu0 0.0
    %1515 = vmatpush1.msra.mxu0 0.0
    %1516 = vmatprep.subr.mxu0 0.0
    %1517 = vmatpush1.msra.mxu0 0.0
    %1518 = vmatprep.subr.mxu0 0.0
    %1519 = vmatpush1.msra.mxu0 0.0
    %1520 = vmatprep.subr.mxu0 0.0
    %1521 = vmatpush1.msra.mxu0 0.0
    %1522 = vmatprep.subr.mxu0 0.0
    %1523 = vmatpush1.msra.mxu0 0.0
    %1524 = vmatprep.subr.mxu0 0.0
    %1525 = vmatpush1.msra.mxu0 0.0
    %1526 = vmatprep.subr.mxu0 0.0
    %1527 = vmatpush1.msra.mxu0 0.0
    %1528 = vmatprep.subr.mxu0 0.0
    %1529 = vmatpush1.msra.mxu0 0.0
    %1530 = vmatprep.subr.mxu0 0.0
    %1531 = vmatpush1.msra.mxu0 0.0
    %1532 = vmatprep.subr.mxu0 0.0
    %1533 = vmatpush1.msra.mxu0 0.0
    %1534 = vmatprep.subr.mxu0 0.0
    %1535 = vmatpush1.msra.mxu0 0.0
    %1536 = vmatprep.subr.mxu0 0.0
    %1537 = vmatpush1.msra.mxu0 0.0
    %1538 = vmatprep.subr.mxu0 0.0
    %1539 = vmatpush1.msra.mxu0 0.0
    %1540 = vmatprep.subr.mxu0 0.0
    %1541 = vmatpush1.msra.mxu0 0.0
    %1542 = vmatprep.subr.mxu0 0.0
    %1543 = vmatpush1.msra.mxu0 0.0
    %1544 = vmatprep.subr.mxu0 0.0
    %1545 = vmatpush1.msra.mxu0 0.0
    %1546 = vmatprep.subr.mxu0 0.0
    %1547 = vmatpush1.msra.mxu0 0.0
    %1548 = vmatprep.subr.mxu0 0.0
    %1549 = vmatpush1.msra.mxu0 0.0
    %1550 = vmatprep.subr.mxu0 0.0
    %1551 = vmatpush1.msra.mxu0 0.0
    %1552 = vmatprep.subr.mxu0 0.0
    %1553 = vmatpush1.msra.mxu0 0.0
    %1554 = vmatprep.subr.mxu0 0.0
    %1555 = vmatpush1.msra.mxu0 0.0
    %1556 = vmatprep.subr.mxu0 0.0
    %1557 = vmatpush1.msra.mxu0 0.0
    %1558 = vmatprep.subr.mxu0 0.0
    %1559 = vmatpush1.msra.mxu0 0.0
    %1560 = vmatprep.subr.mxu0 0.0
    %1561 = vmatpush1.msra.mxu0 0.0
    %1562 = vmatprep.subr.mxu0 0.0
    %1563 = vmatpush1.msra.mxu0 0.0
    %1564 = vmatprep.mubr.f32.mxu0 0.0
    %v1565 = vand.u32 %v1250, 4294901760
    %v1566 = vsub.f32 %v1250, %v1565
    %v1567 = vand.u32 %v1566, 4294901760
    %1568 = vmatmul.mubr.f32.gmra.mrb[0].mxu0 %v1567
    %v1569 = vpop.f32.mrb[0].mxu0
    %v1570 = vadd.f32 %v1494, %v1569
    %v1571 = vpop.f32.mrb[0].mxu0
    %1572 = vdwg.mxu0
    %1573 = vmatprep.subr.mxu0 0.0
    %v1574 = vand.u32 %v1239, 4294901760
    %v1575 = vsub.f32 %v1239, %v1574
    %v1576 = vand.u32 %v1575, 4294901760
    %1577 = vmatpush1.msra.mxu0 %v1576
    %1578 = vmatprep.subr.mxu0 0.0
    %v1579 = vand.u32 %v1240, 4294901760
    %v1580 = vsub.f32 %v1240, %v1579
    %v1581 = vand.u32 %v1580, 4294901760
    %1582 = vmatpush1.msra.mxu0 %v1581
    %1583 = vmatprep.subr.mxu0 0.0
    %v1584 = vand.u32 %v1253, 4294901760
    %v1585 = vsub.f32 %v1253, %v1584
    %v1586 = vand.u32 %v1585, 4294901760
    %1587 = vmatpush1.msra.mxu0 %v1586
    %1588 = vmatprep.subr.mxu0 0.0
    %1589 = vmatpush1.msra.mxu0 0.0
    %1590 = vmatprep.subr.mxu0 0.0
    %1591 = vmatpush1.msra.mxu0 0.0
    %1592 = vmatprep.subr.mxu0 0.0
    %1593 = vmatpush1.msra.mxu0 0.0
    %1594 = vmatprep.subr.mxu0 0.0
    %1595 = vmatpush1.msra.mxu0 0.0
    %1596 = vmatprep.subr.mxu0 0.0
    %1597 = vmatpush1.msra.mxu0 0.0
    %1598 = vmatprep.subr.mxu0 0.0
    %1599 = vmatpush1.msra.mxu0 0.0
    %1600 = vmatprep.subr.mxu0 0.0
    %1601 = vmatpush1.msra.mxu0 0.0
    %1602 = vmatprep.subr.mxu0 0.0
    %1603 = vmatpush1.msra.mxu0 0.0
    %1604 = vmatprep.subr.mxu0 0.0
    %1605 = vmatpush1.msra.mxu0 0.0
    %1606 = vmatprep.subr.mxu0 0.0
    %1607 = vmatpush1.msra.mxu0 0.0
    %1608 = vmatprep.subr.mxu0 0.0
    %1609 = vmatpush1.msra.mxu0 0.0
    %1610 = vmatprep.subr.mxu0 0.0
    %1611 = vmatpush1.msra.mxu0 0.0
    %1612 = vmatprep.subr.mxu0 0.0
    %1613 = vmatpush1.msra.mxu0 0.0
    %1614 = vmatprep.subr.mxu0 0.0
    %1615 = vmatpush1.msra.mxu0 0.0
    %1616 = vmatprep.subr.mxu0 0.0
    %1617 = vmatpush1.msra.mxu0 0.0
    %1618 = vmatprep.subr.mxu0 0.0
    %1619 = vmatpush1.msra.mxu0 0.0
    %1620 = vmatprep.subr.mxu0 0.0
    %1621 = vmatpush1.msra.mxu0 0.0
    %1622 = vmatprep.subr.mxu0 0.0
    %1623 = vmatpush1.msra.mxu0 0.0
    %1624 = vmatprep.subr.mxu0 0.0
    %1625 = vmatpush1.msra.mxu0 0.0
    %1626 = vmatprep.subr.mxu0 0.0
    %1627 = vmatpush1.msra.mxu0 0.0
    %1628 = vmatprep.subr.mxu0 0.0
    %1629 = vmatpush1.msra.mxu0 0.0
    %1630 = vmatprep.subr.mxu0 0.0
    %1631 = vmatpush1.msra.mxu0 0.0
    %1632 = vmatprep.subr.mxu0 0.0
    %1633 = vmatpush1.msra.mxu0 0.0
    %1634 = vmatprep.subr.mxu0 0.0
    %1635 = vmatpush1.msra.mxu0 0.0
    %1636 = vmatprep.subr.mxu0 0.0
    %1637 = vmatpush1.msra.mxu0 0.0
    %1638 = vmatprep.subr.mxu0 0.0
    %1639 = vmatpush1.msra.mxu0 0.0
    %1640 = vmatprep.subr.mxu0 0.0
    %1641 = vmatpush1.msra.mxu0 0.0
    %1642 = vmatprep.subr.mxu0 0.0
    %1643 = vmatpush1.msra.mxu0 0.0
    %1644 = vmatprep.subr.mxu0 0.0
    %1645 = vmatpush1.msra.mxu0 0.0
    %1646 = vmatprep.mubr.f32.mxu0 0.0
    %v1647 = vand.u32 %v1250, 4294901760
    %1648 = vmatmul.mubr.f32.gmra.mrb[0].mxu0 %v1647
    %v1649 = vpop.f32.mrb[0].mxu0
    %v1650 = vadd.f32 %v1570, %v1649
    %v1651 = vpop.f32.mrb[0].mxu0
    %1652 = vdwg.mxu0
    %1653 = vmatprep.subr.mxu0 0.0
    %v1654 = vand.u32 %v1239, 4294901760
    %1655 = vmatpush1.msra.mxu0 %v1654
    %1656 = vmatprep.subr.mxu0 0.0
    %v1657 = vand.u32 %v1240, 4294901760
    %1658 = vmatpush1.msra.mxu0 %v1657
    %1659 = vmatprep.subr.mxu0 0.0
    %v1660 = vand.u32 %v1253, 4294901760
    %1661 = vmatpush1.msra.mxu0 %v1660
    %1662 = vmatprep.subr.mxu0 0.0
    %1663 = vmatpush1.msra.mxu0 0.0
    %1664 = vmatprep.subr.mxu0 0.0
    %1665 = vmatpush1.msra.mxu0 0.0
    %1666 = vmatprep.subr.mxu0 0.0
    %1667 = vmatpush1.msra.mxu0 0.0
    %1668 = vmatprep.subr.mxu0 0.0
    %1669 = vmatpush1.msra.mxu0 0.0
    %1670 = vmatprep.subr.mxu0 0.0
    %1671 = vmatpush1.msra.mxu0 0.0
    %1672 = vmatprep.subr.mxu0 0.0
    %1673 = vmatpush1.msra.mxu0 0.0
    %1674 = vmatprep.subr.mxu0 0.0
    %1675 = vmatpush1.msra.mxu0 0.0
    %1676 = vmatprep.subr.mxu0 0.0
    %1677 = vmatpush1.msra.mxu0 0.0
    %1678 = vmatprep.subr.mxu0 0.0
    %1679 = vmatpush1.msra.mxu0 0.0
    %1680 = vmatprep.subr.mxu0 0.0
    %1681 = vmatpush1.msra.mxu0 0.0
    %1682 = vmatprep.subr.mxu0 0.0
    %1683 = vmatpush1.msra.mxu0 0.0
    %1684 = vmatprep.subr.mxu0 0.0
    %1685 = vmatpush1.msra.mxu0 0.0
    %1686 = vmatprep.subr.mxu0 0.0
    %1687 = vmatpush1.msra.mxu0 0.0
    %1688 = vmatprep.subr.mxu0 0.0
    %1689 = vmatpush1.msra.mxu0 0.0
    %1690 = vmatprep.subr.mxu0 0.0
    %1691 = vmatpush1.msra.mxu0 0.0
    %1692 = vmatprep.subr.mxu0 0.0
    %1693 = vmatpush1.msra.mxu0 0.0
    %1694 = vmatprep.subr.mxu0 0.0
    %1695 = vmatpush1.msra.mxu0 0.0
    %1696 = vmatprep.subr.mxu0 0.0
    %1697 = vmatpush1.msra.mxu0 0.0
    %1698 = vmatprep.subr.mxu0 0.0
    %1699 = vmatpush1.msra.mxu0 0.0
    %1700 = vmatprep.subr.mxu0 0.0
    %1701 = vmatpush1.msra.mxu0 0.0
    %1702 = vmatprep.subr.mxu0 0.0
    %1703 = vmatpush1.msra.mxu0 0.0
    %1704 = vmatprep.subr.mxu0 0.0
    %1705 = vmatpush1.msra.mxu0 0.0
    %1706 = vmatprep.subr.mxu0 0.0
    %1707 = vmatpush1.msra.mxu0 0.0
    %1708 = vmatprep.subr.mxu0 0.0
    %1709 = vmatpush1.msra.mxu0 0.0
    %1710 = vmatprep.subr.mxu0 0.0
    %1711 = vmatpush1.msra.mxu0 0.0
    %1712 = vmatprep.subr.mxu0 0.0
    %1713 = vmatpush1.msra.mxu0 0.0
    %1714 = vmatprep.subr.mxu0 0.0
    %1715 = vmatpush1.msra.mxu0 0.0
    %1716 = vmatprep.subr.mxu0 0.0
    %1717 = vmatpush1.msra.mxu0 0.0
    %1718 = vmatprep.subr.mxu0 0.0
    %1719 = vmatpush1.msra.mxu0 0.0
    %1720 = vmatprep.mubr.f32.mxu0 0.0
    %v1721 = vand.u32 %v1250, 4294901760
    %1722 = vmatmul.mubr.f32.gmra.mrb[0].mxu0 %v1721
    %v1723 = vpop.f32.mrb[0].mxu0
    %v1724 = vadd.f32 %v1650, %v1723
    %v1725 = vpop.f32.mrb[0].mxu0
    %1726 = vdwg.mxu0
    %1727 = vst [vmem:[#allocation2] sm:$0x7] %v1724
    // Predicated region
    $region30: #{swpm_forward_t.1} parent=1 // pred_check
      _
    $region31: #{swpm_forward_t.1} parent=1 // pred_check_branch
      %1729 = sbr.rel (0) target = $region33
    $region32: #{swpm_forward_t.1} parent=1 // pred_region
      %s1731 = ssub.s32 64, 64
      %1732 = vsyncadd [#allocation3], %s1731
      %s1734 = sshll.u32 [#allocation2], 4
      %s1735 = int_to_ptr.vmem [resolvable:$true] %s1734
      %1737 = dma.vmem_to_hbm [thread:$0]  %s1735, 64, %s7, [#allocation3]
    $region33: #{swpm_forward_t.1} parent=1 // pred_fallthru
      _
    // Predicated region
    $region34: #{swpm_forward_t.1} parent=1 // pred_check
      _
    $region35: #{swpm_forward_t.1} parent=1 // pred_check_branch
      %1739 = sbr.rel (0) target = $region37
    $region36: #{swpm_forward_t.1} parent=1 // pred_region
      %1740 = dma.done [#allocation3], 64
    $region37: #{swpm_forward_t.1} parent=1 // pred_fallthru
      _
    %1741 = vsyncpa [#allocation3], 1

</llo_original>
